<compile_context>
chip_gen: v7x
topology: tpu7x:2x2x1
jax: 0.10.0
libtpu: 0.0.40
codegen_flags: <defaults>
</compile_context>

<pallas_src>
import functools

import jax
import jax.numpy as jnp
from jax.experimental import pallas as pl
from jax.experimental.pallas import tpu as pltpu

PAD_INDEX = 0
_LANE = 128


# ---------------------------------------------------------------------------
# VMEM budgeting (generation-aware: 128 MiB phys on v5e/v6e, 64 MiB on v7x)
# ---------------------------------------------------------------------------

@functools.lru_cache(maxsize=1)
def _vmem_limit_bytes():
    phys = 64 * 1024 * 1024                       # conservative fallback (v7x)
    try:
        phys = int(pltpu.get_tpu_info().vmem_capacity_bytes)
    except Exception:
        pass
    # ~25% headroom for Mosaic internal scratch; cap at 96 MiB.
    return min((phys * 3) // 4, 96 * 1024 * 1024)


def _round_up(x, m):
    return ((x + m - 1) // m) * m


def _pad_axis(a, axis, new_size):
    pad = new_size - a.shape[axis]
    if pad == 0:
        return a
    widths = [(0, 0)] * a.ndim
    widths[axis] = (0, pad)
    return jnp.pad(a, widths)


def _choose_row_tile(n_rows, din, htot, max_hp, resident_bytes, vmem_limit):
    """Largest 128-multiple row tile that fits VMEM after the resident weight
    slabs AND exactly divides n_rows (so there is no dead-row compute)."""
    budget = max(vmem_limit - resident_bytes - (4 << 20), 4 << 20)
    per_row = (2 * 2 * din            # bf16 input rows, double-buffered
               + 2 * 2 * htot         # bf16 output rows (4 heads), double-buffered
               + (4 + 2) * htot       # f32 h1 + its bf16 copy
               + 4 * max_hp)          # f32 h2 accumulator (widest head)
    tm = max(_LANE, (budget // per_row) // _LANE * _LANE)
    tm = min(tm, 2048, n_rows)
    while n_rows % tm:                # n_rows and tm are multiples of 128
        tm -= _LANE
    return tm


def _choose_o_tile(o_dim, tp, hp, out_bytes, budget):
    """Largest output-channel tile keeping one biaffine grid step inside VMEM."""
    best = 1
    for ot in range(1, o_dim + 1):
        need = (2 * hp * ot * hp * 2            # U block (bf16, <=2 buffers)
                + 2 * ot * tp * tp * out_bytes  # score block (2 buffers)
                + ot * tp * hp * (4 + 2)        # f32 tmp + bf16 copy
                + 2 * 2 * tp * hp * 2)          # rh + rd (bf16, 2 buffers)
        if need <= budget:
            best = ot
    # prefer an exact divisor of o_dim (no channel padding) unless it costs >2x
    div = best
    while o_dim % div:
        div -= 1
    return div if 2 * div >= best else best


# ---------------------------------------------------------------------------
# fused 4-way 2-layer ReLU MLP kernel (one HBM read of the activations)
# ---------------------------------------------------------------------------

def _fused_mlp_kernel(x_ref, w1_ref, b1_ref,
                      w2a_ref, w2b_ref, w2c_ref, w2d_ref,
                      b2a_ref, b2b_ref, b2c_ref, b2d_ref,
                      oa_ref, ob_ref, oc_ref, od_ref, *, seg_bounds):
    # h1 = relu(x @ W1_cat + b1)   -- one wide MXU matmul for all four MLPs
    h1 = jnp.dot(x_ref[...], w1_ref[...], preferred_element_type=jnp.float32)
    h1 = jnp.maximum(h1 + b1_ref[...], 0.0).astype(jnp.bfloat16)
    for (lo, hi), w2_ref, b2_ref, o_ref in zip(
            seg_bounds,
            (w2a_ref, w2b_ref, w2c_ref, w2d_ref),
            (b2a_ref, b2b_ref, b2c_ref, b2d_ref),
            (oa_ref, ob_ref, oc_ref, od_ref)):
        h2 = jnp.dot(h1[:, lo:hi], w2_ref[...],       # 128-aligned static slice
                     preferred_element_type=jnp.float32)
        o_ref[...] = jnp.maximum(h2 + b2_ref[...], 0.0).astype(o_ref.dtype)


def fused_mlp(x, w1, b1, w2_list, b2_list, seg_bounds, hps, *,
              row_tile, vmem_limit):
    """x: [N, Din_p] bf16 (row_tile divides N) -> 4 bf16 arrays [N, hp_i]."""
    n, din = x.shape
    htot = w1.shape[1]
    grid = (n // row_tile,)

    flops = 2 * n * din * htot + 2 * n * sum(hp * hp for hp in hps)
    bytes_accessed = (n * din * 2 + n * htot * 2 + din * htot * 2
                      + sum(hp * hp * 2 for hp in hps) + htot * 4 * 2)

    def resident(shape):
        # constant-index slab: single buffer (no double-buffering waste)
        return pl.BlockSpec(shape, lambda i: (0,) * len(shape),
                            pipeline_mode=pl.Buffered(1))

    in_specs = [pl.BlockSpec((row_tile, din), lambda i: (i, 0)),   # streamed rows
                resident((din, htot)),
                resident((1, htot))]
    in_specs += [resident(w.shape) for w in w2_list]
    in_specs += [resident(b.shape) for b in b2_list]

    out_specs = [pl.BlockSpec((row_tile, hp), lambda i: (i, 0)) for hp in hps]
    out_shape = tuple(jax.ShapeDtypeStruct((n, hp), jnp.bfloat16) for hp in hps)

    return pl.pallas_call(
        functools.partial(_fused_mlp_kernel, seg_bounds=tuple(seg_bounds)),
        out_shape=out_shape,
        grid=grid,
        in_specs=in_specs,
        out_specs=out_specs,
        compiler_params=pltpu.CompilerParams(
            dimension_semantics=("parallel",),
            vmem_limit_bytes=vmem_limit),
        cost_estimate=pl.CostEstimate(flops=flops, transcendentals=0,
                                      bytes_accessed=bytes_accessed),
    )(x, w1, b1, *w2_list, *b2_list)


# ---------------------------------------------------------------------------
# biaffine scorer:  S[b,o] = Rh[b] @ U[o] @ Rd[b]^T   (O-tiled)
# ---------------------------------------------------------------------------

def _biaffine_kernel(rh_ref, rd_ref, u_ref, s_ref, *, o_tile, h_dim):
    rh = rh_ref[0]                                   # (Tp, Hp) bf16
    rd_t = rd_ref[0].T                               # hoisted: one XLU pass/step
    # one wide matmul against the (Hp, o_tile*Hp) U block for this channel tile
    tmp = jnp.dot(rh, u_ref[...], preferred_element_type=jnp.float32)
    tmp = tmp.astype(jnp.bfloat16)                   # (Tp, o_tile*Hp)
    for o in range(o_tile):
        seg = tmp[:, o * h_dim:(o + 1) * h_dim]      # 128-aligned static slice
        s_ref[0, o] = jnp.dot(seg, rd_t,
                              preferred_element_type=jnp.float32
                              ).astype(s_ref.dtype)


def biaffine(rh, rd, u_r, o_dim, *, score_dtype=jnp.float32):
    """rh, rd: [B, Tp, Hp] bf16;  u_r: [Hp, O*Hp] bf16  ->  [B, O_pad, Tp, Tp]."""
    b, tp, hp = rh.shape
    vmem_limit = _vmem_limit_bytes()
    out_bytes = jnp.dtype(score_dtype).itemsize
    o_tile = _choose_o_tile(o_dim, tp, hp, out_bytes, vmem_limit - (2 << 20))
    n_o = -(-o_dim // o_tile)
    o_pad = n_o * o_tile
    if o_pad != o_dim:
        u_r = jnp.pad(u_r, ((0, 0), (0, (o_pad - o_dim) * hp)))

    if n_o == 1:     # constant-index resident slab: single-buffer it
        u_spec = pl.BlockSpec((hp, o_tile * hp), lambda i, j: (0, j),
                              pipeline_mode=pl.Buffered(1))
    else:
        u_spec = pl.BlockSpec((hp, o_tile * hp), lambda i, j: (0, j))

    flops = 2 * b * tp * hp * o_pad * hp + 2 * b * o_pad * tp * tp * hp
    bytes_accessed = (2 * b * tp * hp * 2 + hp * o_pad * hp * 2
                      + b * o_pad * tp * tp * out_bytes)

    return pl.pallas_call(
        functools.partial(_biaffine_kernel, o_tile=o_tile, h_dim=hp),
        out_shape=jax.ShapeDtypeStruct((b, o_pad, tp, tp), score_dtype),
        grid=(b, n_o),
        in_specs=[
            pl.BlockSpec((1, tp, hp), lambda i, j: (i, 0, 0)),
            pl.BlockSpec((1, tp, hp), lambda i, j: (i, 0, 0)),
            u_spec,
        ],
        out_specs=pl.BlockSpec((1, o_tile, tp, tp), lambda i, j: (i, j, 0, 0)),
        compiler_params=pltpu.CompilerParams(
            dimension_semantics=("parallel", "parallel"),
            vmem_limit_bytes=vmem_limit),
        cost_estimate=pl.CostEstimate(flops=flops, transcendentals=0,
                                      bytes_accessed=bytes_accessed),
    )(rh, rd, u_r)


# ---------------------------------------------------------------------------
# Parameter construction (deterministic, mirrors the PyTorch module's layers)
# ---------------------------------------------------------------------------

def make_params(key, vocab, emb_dim, mlp_input, arc_hidden, lab_hidden,
                num_labels):
    ks = jax.random.split(key, 16)

    def lin(k, din, dout, scale=0.1):
        kw, kb = jax.random.split(k)
        return (scale * jax.random.normal(kw, (din, dout), jnp.float32),
                scale * jax.random.normal(kb, (1, dout), jnp.float32))

    params = {}
    params["emb_table"] = 0.1 * jax.random.normal(ks[0], (vocab, emb_dim),
                                                  jnp.float32)
    params["enc_w"], params["enc_b"] = lin(ks[1], emb_dim, mlp_input)

    # Four 2-layer MLPs, as in MLP(mlp_input, H, 2, 'ReLU', p)
    for name, hidden, k1, k2 in (
        ("arc_h", arc_hidden, ks[2], ks[3]),
        ("arc_d", arc_hidden, ks[4], ks[5]),
        ("lab_h", lab_hidden, ks[6], ks[7]),
        ("lab_d", lab_hidden, ks[8], ks[9]),
    ):
        w1, b1 = lin(k1, mlp_input, hidden)
        w2, b2 = lin(k2, hidden, hidden)
        params[name] = (w1, b1, w2, b2)

    # BiAffine bilinear tensors U: [output_dim, input_dim, input_dim]
    params["arc_U"] = 0.1 * jax.random.normal(ks[10], (1, arc_hidden, arc_hidden),
                                              jnp.float32)
    params["lab_U"] = 0.1 * jax.random.normal(ks[11],
                                              (num_labels, lab_hidden, lab_hidden),
                                              jnp.float32)
    return params


def prepare_params(params, mlp_input, arc_hidden, lab_hidden, num_labels):
    """Pad feature dims to 128, concat W1/b1, keep per-head W2/b2, bf16 weights."""
    din_p = _round_up(mlp_input, _LANE)
    ah_p = _round_up(arc_hidden, _LANE)
    lh_p = _round_up(lab_hidden, _LANE)

    def pad2(w, r, c):
        return _pad_axis(_pad_axis(w, 0, r), 1, c)

    w1s, b1s, w2s, b2s, seg_bounds, hps = [], [], [], [], [], []
    off = 0
    for name, hp in (("arc_h", ah_p), ("arc_d", ah_p),
                     ("lab_h", lh_p), ("lab_d", lh_p)):
        w1, b1, w2, b2 = params[name]
        w1s.append(pad2(w1, din_p, hp))
        b1s.append(_pad_axis(b1, 1, hp))
        w2s.append(pad2(w2, hp, hp).astype(jnp.bfloat16))
        b2s.append(_pad_axis(b2, 1, hp).astype(jnp.float32))
        seg_bounds.append((off, off + hp))
        hps.append(hp)
        off += hp

    def prep_u(u, hp):                      # (O, H, H) -> (Hp, O*Hp), bf16
        o = u.shape[0]
        u_p = jnp.pad(u, ((0, 0),
                          (0, hp - u.shape[1]),
                          (0, hp - u.shape[2])))
        return jnp.transpose(u_p, (1, 0, 2)).reshape(hp, o * hp).astype(jnp.bfloat16)

    return {
        "emb_table": params["emb_table"],
        "enc_w": params["enc_w"],
        "enc_b": params["enc_b"],
        "w1": jnp.concatenate(w1s, axis=1).astype(jnp.bfloat16),
        "b1": jnp.concatenate(b1s, axis=1).astype(jnp.float32),
        "w2": tuple(w2s),
        "b2": tuple(b2s),
        "seg_bounds": tuple(seg_bounds),
        "hps": tuple(hps),
        "htot": off,
        "arc_u": prep_u(params["arc_U"], ah_p),
        "lab_u": prep_u(params["lab_U"], lh_p),
        "dims": (din_p, ah_p, lh_p, num_labels),
    }


# ---------------------------------------------------------------------------
# Forward pass (mirrors BiAffineParser.forward)
# ---------------------------------------------------------------------------

def biaffine_parser_forward(prep, words, encoder_type="rnn",
                            lab_score_dtype=jnp.float32):
    B, T = words.shape
    din_p, ah_p, lh_p, num_labels = prep["dims"]

    # aux (lengths / padding mask) — only a real injected encoder consumes it.
    if encoder_type == "rnn":
        aux = jnp.sum((words != PAD_INDEX).astype(jnp.int32), axis=-1)
    elif encoder_type == "transformer":
        aux = (words != PAD_INDEX)[:, None, :]
    else:
        aux = None
    del aux  # stand-in encoder ignores it

    # embedding + encoder stand-ins (plain-JAX glue)
    x = jnp.take(prep["emb_table"], words, axis=0)                 # [B,T,E]
    h = jnp.tanh(x @ prep["enc_w"] + prep["enc_b"][0])             # [B,T,mlp_input]

    # TODO(synk): host-side length bucketing / packing would cut the Tp^2
    #             biaffine padding waste; here T is padded to one global 128-multiple.
    t_p = _round_up(T, _LANE)
    h = _pad_axis(_pad_axis(h, 1, t_p), 2, din_p)                  # [B,Tp,Din_p]
    n0 = B * t_p
    h_flat = h.reshape(n0, din_p).astype(jnp.bfloat16)

    resident_bytes = (int(prep["w1"].size) * 2
                      + sum(int(w.size) * 2 for w in prep["w2"])
                      + int(prep["b1"].size) * 4
                      + sum(int(b.size) * 4 for b in prep["b2"]))
    row_tile = _choose_row_tile(n0, din_p, prep["htot"], max(prep["hps"]),
                                resident_bytes, _vmem_limit_bytes())

    # one fused pallas_call for all four MLPs; four lane-dense outputs so the
    # wrapper needs only free contiguous reshapes (no strided-slice copies).
    arc_h_f, arc_d_f, lab_h_f, lab_d_f = fused_mlp(
        h_flat, prep["w1"], prep["b1"], prep["w2"], prep["b2"],
        prep["seg_bounds"], prep["hps"],
        row_tile=row_tile, vmem_limit=_vmem_limit_bytes())

    arc_h = arc_h_f.reshape(B, t_p, ah_p)
    arc_d = arc_d_f.reshape(B, t_p, ah_p)
    lab_h = lab_h_f.reshape(B, t_p, lh_p)
    lab_d = lab_d_f.reshape(B, t_p, lh_p)

    S_arc = biaffine(arc_h, arc_d, prep["arc_u"], 1)               # [B,1,Tp,Tp]
    # TODO(synk): the lab scorer is HBM-write-bound; pass lab_score_dtype=bfloat16
    #             here (up to ~2x on that kernel) once downstream logit tolerance
    #             is validated against the torch baseline.
    S_lab = biaffine(lab_h, lab_d, prep["lab_u"], num_labels,
                     score_dtype=lab_score_dtype)                  # [B,Lp,Tp,Tp]

    # torch .squeeze(1) removes dim 1 only when its size is 1 (arc case);
    # slice the padded channels / sequence positions back off.
    S_arc = jnp.squeeze(S_arc, axis=1)[:, :T, :T]                  # [B,T,T]
    S_lab = S_lab[:, :num_labels, :T, :T]                          # [B,L,T,T]
    return S_arc, S_lab


# ---------------------------------------------------------------------------
# Reference in plain JAX (same math, mimics the bf16 matmul casts)
# ---------------------------------------------------------------------------

def _ref_forward(params, words):
    c = lambda a: a.astype(jnp.bfloat16)

    x = jnp.take(params["emb_table"], words, axis=0)
    h = jnp.tanh(x @ params["enc_w"] + params["enc_b"][0])

    def mlp(hf, p):
        w1, b1, w2, b2 = p
        a = jnp.maximum(jnp.dot(c(hf), c(w1), preferred_element_type=jnp.float32)
                        + b1[0], 0.0)
        a = c(a)
        o = jnp.maximum(jnp.dot(a, c(w2), preferred_element_type=jnp.float32)
                        + b2[0], 0.0)
        return c(o)

    arc_h = mlp(h, params["arc_h"]); arc_d = mlp(h, params["arc_d"])
    lab_h = mlp(h, params["lab_h"]); lab_d = mlp(h, params["lab_d"])

    def biaff(rh, rd, u):
        tmp = jnp.einsum("btp,opq->botq", rh, c(u),
                         preferred_element_type=jnp.float32)
        tmp = c(tmp)
        return jnp.einsum("botq,bsq->bots", tmp, rd,
                          preferred_element_type=jnp.float32)

    S_arc = jnp.squeeze(biaff(arc_h, arc_d, params["arc_U"]), axis=1)
    S_lab = biaff(lab_h, lab_d, params["lab_U"])
    return S_arc, S_lab


# ---------------------------------------------------------------------------

if __name__ == "__main__":
    B, T = 2, 8
    VOCAB, EMB = 50, 16
    MLP_INPUT = 32
    ARC_HIDDEN = 64
    LAB_HIDDEN = 32
    NUM_LABELS = 4

    key = jax.random.PRNGKey(0)
    kp, kw = jax.random.split(key)
    params = make_params(kp, VOCAB, EMB, MLP_INPUT, ARC_HIDDEN, LAB_HIDDEN,
                         NUM_LABELS)
    prep = prepare_params(params, MLP_INPUT, ARC_HIDDEN, LAB_HIDDEN, NUM_LABELS)

    words = jax.random.randint(kw, (B, T), 0, VOCAB, dtype=jnp.int32)
    words = words.at[1, -2:].set(PAD_INDEX)   # force some padding

    S_arc, S_lab = biaffine_parser_forward(prep, words, encoder_type="rnn")
    S_arc = jax.block_until_ready(S_arc)
    S_lab = jax.block_until_ready(S_lab)

    assert S_arc.shape == (B, T, T), S_arc.shape
    assert S_lab.shape == (B, NUM_LABELS, T, T), S_lab.shape

    R_arc, R_lab = _ref_forward(params, words)
    assert jnp.allclose(S_arc, R_arc, atol=1e-2, rtol=1e-2)
    assert jnp.allclose(S_lab, R_lab, atol=1e-2, rtol=1e-2)

    print("KERNEL_OK")
</pallas_src>

<mosaic_0001>
module attributes {stable_mosaic.version = 11 : i64} {
  func.func @_fused_mlp_kernel(%arg0: i32, %arg1: memref<256x128xbf16, #tpu.memory_space<vmem>>, %arg2: memref<128x512xbf16, #tpu.memory_space<vmem>>, %arg3: memref<1x512xf32, #tpu.memory_space<vmem>>, %arg4: memref<128x128xbf16, #tpu.memory_space<vmem>>, %arg5: memref<128x128xbf16, #tpu.memory_space<vmem>>, %arg6: memref<128x128xbf16, #tpu.memory_space<vmem>>, %arg7: memref<128x128xbf16, #tpu.memory_space<vmem>>, %arg8: memref<1x128xf32, #tpu.memory_space<vmem>>, %arg9: memref<1x128xf32, #tpu.memory_space<vmem>>, %arg10: memref<1x128xf32, #tpu.memory_space<vmem>>, %arg11: memref<1x128xf32, #tpu.memory_space<vmem>>, %arg12: memref<256x128xbf16, #tpu.memory_space<vmem>>, %arg13: memref<256x128xbf16, #tpu.memory_space<vmem>>, %arg14: memref<256x128xbf16, #tpu.memory_space<vmem>>, %arg15: memref<256x128xbf16, #tpu.memory_space<vmem>>) attributes {dimension_semantics = [#tpu.dimension_semantics<parallel>], iteration_bounds = array<i64: 1>, scalar_prefetch = 0 : i64, scratch_operands = 0 : i64, tpu.core_type = #tpu.core_type<tc>, window_params = [{transform_indices = @transform_0, window_bounds = array<i64: 256, 128>}, {pipeline_mode = #tpu.pipeline_mode<synchronous>, transform_indices = @transform_1, window_bounds = array<i64: 128, 512>}, {pipeline_mode = #tpu.pipeline_mode<synchronous>, transform_indices = @transform_2, window_bounds = array<i64: 1, 512>}, {pipeline_mode = #tpu.pipeline_mode<synchronous>, transform_indices = @transform_3, window_bounds = array<i64: 128, 128>}, {pipeline_mode = #tpu.pipeline_mode<synchronous>, transform_indices = @transform_4, window_bounds = array<i64: 128, 128>}, {pipeline_mode = #tpu.pipeline_mode<synchronous>, transform_indices = @transform_5, window_bounds = array<i64: 128, 128>}, {pipeline_mode = #tpu.pipeline_mode<synchronous>, transform_indices = @transform_6, window_bounds = array<i64: 128, 128>}, {pipeline_mode = #tpu.pipeline_mode<synchronous>, transform_indices = @transform_7, window_bounds = array<i64: 1, 128>}, {pipeline_mode = #tpu.pipeline_mode<synchronous>, transform_indices = @transform_8, window_bounds = array<i64: 1, 128>}, {pipeline_mode = #tpu.pipeline_mode<synchronous>, transform_indices = @transform_9, window_bounds = array<i64: 1, 128>}, {pipeline_mode = #tpu.pipeline_mode<synchronous>, transform_indices = @transform_10, window_bounds = array<i64: 1, 128>}, {transform_indices = @transform_11, window_bounds = array<i64: 256, 128>}, {transform_indices = @transform_12, window_bounds = array<i64: 256, 128>}, {transform_indices = @transform_13, window_bounds = array<i64: 256, 128>}, {transform_indices = @transform_14, window_bounds = array<i64: 256, 128>}]} {
    %c0 = arith.constant 0 : index
    %c0_0 = arith.constant 0 : index
    %0 = vector.load %arg1[%c0, %c0_0] : memref<256x128xbf16, #tpu.memory_space<vmem>>, vector<256x128xbf16>
    %c0_1 = arith.constant 0 : index
    %c0_2 = arith.constant 0 : index
    %1 = vector.load %arg2[%c0_1, %c0_2] : memref<128x512xbf16, #tpu.memory_space<vmem>>, vector<128x512xbf16>
    %cst = arith.constant dense<0.000000e+00> : vector<256x512xf32>
    %2 = tpu.matmul %0, %1, %cst {dimension_numbers = #tpu.dot_dimension_numbers<[1], [0], [0], [1], [0, 0, 1, 1], [], []>} : vector<256x128xbf16>, vector<128x512xbf16>, vector<256x512xf32> -> vector<256x512xf32>
    %c0_3 = arith.constant 0 : index
    %c0_4 = arith.constant 0 : index
    %3 = vector.load %arg3[%c0_3, %c0_4] : memref<1x512xf32, #tpu.memory_space<vmem>>, vector<1x512xf32>
    %4 = vector.broadcast %3 : vector<1x512xf32> to vector<256x512xf32>
    %5 = arith.addf %2, %4 : vector<256x512xf32>
    %cst_5 = arith.constant 0.000000e+00 : f32
    %6 = vector.broadcast %cst_5 : f32 to vector<256x512xf32>
    %7 = arith.maximumf %5, %6 : vector<256x512xf32>
    %8 = arith.truncf %7 : vector<256x512xf32> to vector<256x512xbf16>
    %9 = vector.extract_strided_slice %8 {offsets = [0, 0], sizes = [256, 128], strides = [1, 1]} : vector<256x512xbf16> to vector<256x128xbf16>
    %c0_6 = arith.constant 0 : index
    %c0_7 = arith.constant 0 : index
    %10 = vector.load %arg4[%c0_6, %c0_7] : memref<128x128xbf16, #tpu.memory_space<vmem>>, vector<128x128xbf16>
    %cst_8 = arith.constant dense<0.000000e+00> : vector<256x128xf32>
    %11 = tpu.matmul %9, %10, %cst_8 {dimension_numbers = #tpu.dot_dimension_numbers<[1], [0], [0], [1], [0, 0, 1, 1], [], []>} : vector<256x128xbf16>, vector<128x128xbf16>, vector<256x128xf32> -> vector<256x128xf32>
    %c0_9 = arith.constant 0 : index
    %c0_10 = arith.constant 0 : index
    %12 = vector.load %arg8[%c0_9, %c0_10] : memref<1x128xf32, #tpu.memory_space<vmem>>, vector<1x128xf32>
    %13 = vector.broadcast %12 : vector<1x128xf32> to vector<256x128xf32>
    %14 = arith.addf %11, %13 : vector<256x128xf32>
    %cst_11 = arith.constant 0.000000e+00 : f32
    %15 = vector.broadcast %cst_11 : f32 to vector<256x128xf32>
    %16 = arith.maximumf %14, %15 : vector<256x128xf32>
    %17 = arith.truncf %16 : vector<256x128xf32> to vector<256x128xbf16>
    %c0_12 = arith.constant 0 : index
    %c0_13 = arith.constant 0 : index
    %18 = vector.load %arg12[%c0_12, %c0_13] : memref<256x128xbf16, #tpu.memory_space<vmem>>, vector<256x128xbf16>
    tpu.vector_store %arg12[%c0_12, %c0_13], %17 {strides = array<i32>} : memref<256x128xbf16, #tpu.memory_space<vmem>>, vector<256x128xbf16>,
    %19 = vector.extract_strided_slice %8 {offsets = [0, 128], sizes = [256, 128], strides = [1, 1]} : vector<256x512xbf16> to vector<256x128xbf16>
    %c0_14 = arith.constant 0 : index
    %c0_15 = arith.constant 0 : index
    %20 = vector.load %arg5[%c0_14, %c0_15] : memref<128x128xbf16, #tpu.memory_space<vmem>>, vector<128x128xbf16>
    %cst_16 = arith.constant dense<0.000000e+00> : vector<256x128xf32>
    %21 = tpu.matmul %19, %20, %cst_16 {dimension_numbers = #tpu.dot_dimension_numbers<[1], [0], [0], [1], [0, 0, 1, 1], [], []>} : vector<256x128xbf16>, vector<128x128xbf16>, vector<256x128xf32> -> vector<256x128xf32>
    %c0_17 = arith.constant 0 : index
    %c0_18 = arith.constant 0 : index
    %22 = vector.load %arg9[%c0_17, %c0_18] : memref<1x128xf32, #tpu.memory_space<vmem>>, vector<1x128xf32>
    %23 = vector.broadcast %22 : vector<1x128xf32> to vector<256x128xf32>
    %24 = arith.addf %21, %23 : vector<256x128xf32>
    %cst_19 = arith.constant 0.000000e+00 : f32
    %25 = vector.broadcast %cst_19 : f32 to vector<256x128xf32>
    %26 = arith.maximumf %24, %25 : vector<256x128xf32>
    %27 = arith.truncf %26 : vector<256x128xf32> to vector<256x128xbf16>
    %c0_20 = arith.constant 0 : index
    %c0_21 = arith.constant 0 : index
    %28 = vector.load %arg13[%c0_20, %c0_21] : memref<256x128xbf16, #tpu.memory_space<vmem>>, vector<256x128xbf16>
    tpu.vector_store %arg13[%c0_20, %c0_21], %27 {strides = array<i32>} : memref<256x128xbf16, #tpu.memory_space<vmem>>, vector<256x128xbf16>,
    %29 = vector.extract_strided_slice %8 {offsets = [0, 256], sizes = [256, 128], strides = [1, 1]} : vector<256x512xbf16> to vector<256x128xbf16>
    %c0_22 = arith.constant 0 : index
    %c0_23 = arith.constant 0 : index
    %30 = vector.load %arg6[%c0_22, %c0_23] : memref<128x128xbf16, #tpu.memory_space<vmem>>, vector<128x128xbf16>
    %cst_24 = arith.constant dense<0.000000e+00> : vector<256x128xf32>
    %31 = tpu.matmul %29, %30, %cst_24 {dimension_numbers = #tpu.dot_dimension_numbers<[1], [0], [0], [1], [0, 0, 1, 1], [], []>} : vector<256x128xbf16>, vector<128x128xbf16>, vector<256x128xf32> -> vector<256x128xf32>
    %c0_25 = arith.constant 0 : index
    %c0_26 = arith.constant 0 : index
    %32 = vector.load %arg10[%c0_25, %c0_26] : memref<1x128xf32, #tpu.memory_space<vmem>>, vector<1x128xf32>
    %33 = vector.broadcast %32 : vector<1x128xf32> to vector<256x128xf32>
    %34 = arith.addf %31, %33 : vector<256x128xf32>
    %cst_27 = arith.constant 0.000000e+00 : f32
    %35 = vector.broadcast %cst_27 : f32 to vector<256x128xf32>
    %36 = arith.maximumf %34, %35 : vector<256x128xf32>
    %37 = arith.truncf %36 : vector<256x128xf32> to vector<256x128xbf16>
    %c0_28 = arith.constant 0 : index
    %c0_29 = arith.constant 0 : index
    %38 = vector.load %arg14[%c0_28, %c0_29] : memref<256x128xbf16, #tpu.memory_space<vmem>>, vector<256x128xbf16>
    tpu.vector_store %arg14[%c0_28, %c0_29], %37 {strides = array<i32>} : memref<256x128xbf16, #tpu.memory_space<vmem>>, vector<256x128xbf16>,
    %39 = vector.extract_strided_slice %8 {offsets = [0, 384], sizes = [256, 128], strides = [1, 1]} : vector<256x512xbf16> to vector<256x128xbf16>
    %c0_30 = arith.constant 0 : index
    %c0_31 = arith.constant 0 : index
    %40 = vector.load %arg7[%c0_30, %c0_31] : memref<128x128xbf16, #tpu.memory_space<vmem>>, vector<128x128xbf16>
    %cst_32 = arith.constant dense<0.000000e+00> : vector<256x128xf32>
    %41 = tpu.matmul %39, %40, %cst_32 {dimension_numbers = #tpu.dot_dimension_numbers<[1], [0], [0], [1], [0, 0, 1, 1], [], []>} : vector<256x128xbf16>, vector<128x128xbf16>, vector<256x128xf32> -> vector<256x128xf32>
    %c0_33 = arith.constant 0 : index
    %c0_34 = arith.constant 0 : index
    %42 = vector.load %arg11[%c0_33, %c0_34] : memref<1x128xf32, #tpu.memory_space<vmem>>, vector<1x128xf32>
    %43 = vector.broadcast %42 : vector<1x128xf32> to vector<256x128xf32>
    %44 = arith.addf %41, %43 : vector<256x128xf32>
    %cst_35 = arith.constant 0.000000e+00 : f32
    %45 = vector.broadcast %cst_35 : f32 to vector<256x128xf32>
    %46 = arith.maximumf %44, %45 : vector<256x128xf32>
    %47 = arith.truncf %46 : vector<256x128xf32> to vector<256x128xbf16>
    %c0_36 = arith.constant 0 : index
    %c0_37 = arith.constant 0 : index
    %48 = vector.load %arg15[%c0_36, %c0_37] : memref<256x128xbf16, #tpu.memory_space<vmem>>, vector<256x128xbf16>
    tpu.vector_store %arg15[%c0_36, %c0_37], %47 {strides = array<i32>} : memref<256x128xbf16, #tpu.memory_space<vmem>>, vector<256x128xbf16>,
    return
  }
  func.func @transform_0(%arg0: i32) -> (i32, i32) {
    %c0_i32 = arith.constant 0 : i32
    %c0_i32_0 = arith.constant 0 : i32
    return %arg0, %c0_i32 : i32, i32
  }
  func.func @transform_1(%arg0: i32) -> (i32, i32) {
    %c0_i32 = arith.constant 0 : i32
    %c0_i32_0 = arith.constant 0 : i32
    %c0_i32_1 = arith.constant 0 : i32
    return %c0_i32, %c0_i32_0 : i32, i32
  }
  func.func @transform_2(%arg0: i32) -> (i32, i32) {
    %c0_i32 = arith.constant 0 : i32
    %c0_i32_0 = arith.constant 0 : i32
    %c0_i32_1 = arith.constant 0 : i32
    return %c0_i32, %c0_i32_0 : i32, i32
  }
  func.func @transform_3(%arg0: i32) -> (i32, i32) {
    %c0_i32 = arith.constant 0 : i32
    %c0_i32_0 = arith.constant 0 : i32
    %c0_i32_1 = arith.constant 0 : i32
    return %c0_i32, %c0_i32_0 : i32, i32
  }
  func.func @transform_4(%arg0: i32) -> (i32, i32) {
    %c0_i32 = arith.constant 0 : i32
    %c0_i32_0 = arith.constant 0 : i32
    %c0_i32_1 = arith.constant 0 : i32
    return %c0_i32, %c0_i32_0 : i32, i32
  }
  func.func @transform_5(%arg0: i32) -> (i32, i32) {
    %c0_i32 = arith.constant 0 : i32
    %c0_i32_0 = arith.constant 0 : i32
    %c0_i32_1 = arith.constant 0 : i32
    return %c0_i32, %c0_i32_0 : i32, i32
  }
  func.func @transform_6(%arg0: i32) -> (i32, i32) {
    %c0_i32 = arith.constant 0 : i32
    %c0_i32_0 = arith.constant 0 : i32
    %c0_i32_1 = arith.constant 0 : i32
    return %c0_i32, %c0_i32_0 : i32, i32
  }
  func.func @transform_7(%arg0: i32) -> (i32, i32) {
    %c0_i32 = arith.constant 0 : i32
    %c0_i32_0 = arith.constant 0 : i32
    %c0_i32_1 = arith.constant 0 : i32
    return %c0_i32, %c0_i32_0 : i32, i32
  }
  func.func @transform_8(%arg0: i32) -> (i32, i32) {
    %c0_i32 = arith.constant 0 : i32
    %c0_i32_0 = arith.constant 0 : i32
    %c0_i32_1 = arith.constant 0 : i32
    return %c0_i32, %c0_i32_0 : i32, i32
  }
  func.func @transform_9(%arg0: i32) -> (i32, i32) {
    %c0_i32 = arith.constant 0 : i32
    %c0_i32_0 = arith.constant 0 : i32
    %c0_i32_1 = arith.constant 0 : i32
    return %c0_i32, %c0_i32_0 : i32, i32
  }
  func.func @transform_10(%arg0: i32) -> (i32, i32) {
    %c0_i32 = arith.constant 0 : i32
    %c0_i32_0 = arith.constant 0 : i32
    %c0_i32_1 = arith.constant 0 : i32
    return %c0_i32, %c0_i32_0 : i32, i32
  }
  func.func @transform_11(%arg0: i32) -> (i32, i32) {
    %c0_i32 = arith.constant 0 : i32
    %c0_i32_0 = arith.constant 0 : i32
    return %arg0, %c0_i32 : i32, i32
  }
  func.func @transform_12(%arg0: i32) -> (i32, i32) {
    %c0_i32 = arith.constant 0 : i32
    %c0_i32_0 = arith.constant 0 : i32
    return %arg0, %c0_i32 : i32, i32
  }
  func.func @transform_13(%arg0: i32) -> (i32, i32) {
    %c0_i32 = arith.constant 0 : i32
    %c0_i32_0 = arith.constant 0 : i32
    return %arg0, %c0_i32 : i32, i32
  }
  func.func @transform_14(%arg0: i32) -> (i32, i32) {
    %c0_i32 = arith.constant 0 : i32
    %c0_i32_0 = arith.constant 0 : i32
    return %arg0, %c0_i32 : i32, i32
  }
}

</mosaic_0001>

<llo_original>
// kernel: tpu_custom_call.1
$region0: #{tpu_custom_call.1}
  #allocation0 [shape = 'u32[]', space=smem, size = 0x4, offset = 0x4, fixed_abs, tag = 'smem constant byte address 0x4 - core index']
  #allocation1 [shape = 'u32[144,128]{1,0:T(1,128)}', space=vmem, size = 0x12000, scoped, tag = 'internal scratch']
  %s0 = inlined_call_operand.hbm [shape: bf16[256,128], index: 0, kind: input, shape index: {}]
  %s1 = inlined_call_operand.hbm [shape: bf16[128,512], index: 1, kind: input, shape index: {}]
  %s2 = inlined_call_operand.vmem [shape: f32[1,512], index: 2, kind: input, shape index: {}]
  %s3 = inlined_call_operand.hbm [shape: bf16[128,128], index: 3, kind: input, shape index: {}]
  %s4 = inlined_call_operand.hbm [shape: bf16[128,128], index: 4, kind: input, shape index: {}]
  %s5 = inlined_call_operand.hbm [shape: bf16[128,128], index: 5, kind: input, shape index: {}]
  %s6 = inlined_call_operand.hbm [shape: bf16[128,128], index: 6, kind: input, shape index: {}]
  %s7 = inlined_call_operand.vmem [shape: f32[1,128], index: 7, kind: input, shape index: {}]
  %s8 = inlined_call_operand.vmem [shape: f32[1,128], index: 8, kind: input, shape index: {}]
  %s9 = inlined_call_operand.vmem [shape: f32[1,128], index: 9, kind: input, shape index: {}]
  %s10 = inlined_call_operand.vmem [shape: f32[1,128], index: 10, kind: input, shape index: {}]
  %s11 = inlined_call_operand.hbm [shape: bf16[256,128], index: 11, kind: output, shape index: {0}]
  %s12 = inlined_call_operand.hbm [shape: bf16[256,128], index: 12, kind: output, shape index: {1}]
  %s13 = inlined_call_operand.hbm [shape: bf16[256,128], index: 13, kind: output, shape index: {2}]
  %s14 = inlined_call_operand.hbm [shape: bf16[256,128], index: 14, kind: output, shape index: {3}]
  %15 = xla_tuple %s11, %s12, %s13, %s14
  %s16 = sld [smem:[#allocation0]]
  $region102: #{tpu_custom_call.1} parent=0
    _
  %s18 = ssub.s32 1, %s16
  %s19 = scalar_select 0, %s18, %s16
  $region1: #{tpu_custom_call.1} parent=0
    #allocation2 [shape = 'u8[65536]{0}', space=vmem, size = 0x10000, scoped, tag = 'input window, operand 0, single buffered']
    #allocation3 [shape = 's32[1]{0}', space=sflag, size = 0x4, scoped, tag = 'scoped memory for tpu_custom_call.1']
    #allocation4 [shape = 's32[1]{0}', space=sflag, size = 0x4, scoped, tag = 'scoped memory for tpu_custom_call.1']
    #allocation5 [shape = 'u8[131072]{0}', space=vmem, size = 0x20000, scoped, tag = 'input window, operand 1, single buffered']
    #allocation6 [shape = 's32[1]{0}', space=sflag, size = 0x4, scoped, tag = 'scoped memory for tpu_custom_call.1']
    #allocation7 [shape = 'u8[32768]{0}', space=vmem, size = 0x8000, scoped, tag = 'input window, operand 3, single buffered']
    #allocation8 [shape = 'u8[32768]{0}', space=vmem, size = 0x8000, scoped, tag = 'input window, operand 4, single buffered']
    #allocation9 [shape = 's32[1]{0}', space=sflag, size = 0x4, scoped, tag = 'scoped memory for tpu_custom_call.1']
    #allocation10 [shape = 'u8[32768]{0}', space=vmem, size = 0x8000, scoped, tag = 'input window, operand 5, single buffered']
    #allocation11 [shape = 'u8[32768]{0}', space=vmem, size = 0x8000, scoped, tag = 'input window, operand 6, single buffered']
    #allocation12 [shape = 's32[1]{0}', space=sflag, size = 0x4, scoped, tag = 'scoped memory for tpu_custom_call.1']
    #allocation13 [shape = 'u8[65536]{0}', space=vmem, size = 0x10000, scoped, tag = 'output window, operand 0, single buffered']
    #allocation14 [shape = 'u8[65536]{0}', space=vmem, size = 0x10000, scoped, tag = 'output window, operand 1, single buffered']
    #allocation15 [shape = 's32[1]{0}', space=sflag, size = 0x4, scoped, tag = 'scoped memory for tpu_custom_call.1']
    #allocation16 [shape = 'u8[65536]{0}', space=vmem, size = 0x10000, scoped, tag = 'output window, operand 2, single buffered']
    #allocation17 [shape = 'u8[65536]{0}', space=vmem, size = 0x10000, scoped, tag = 'output window, operand 3, single buffered']
    #allocation18 [shape = 's32[1]{0}', space=sflag, size = 0x4, scoped, tag = 'scoped memory for tpu_custom_call.1']
    %20 = vsyncpa [#allocation3], 0
    %21 = vsyncpa [#allocation6], 0
    %22 = vsyncpa [#allocation9], 0
    %23 = vsyncpa [#allocation12], 0
    %24 = vsyncpa [#allocation4], 0
    %25 = vsyncpa [#allocation15], 0
    %26 = vsyncpa [#allocation18], 0
    // Predicated region
    $region2: #{tpu_custom_call.1} parent=1 // pred_check
      _
    $region3: #{tpu_custom_call.1} parent=1 // pred_check_branch
      %28 = sbr.rel (0) target = $region5
    $region4: #{tpu_custom_call.1} parent=1 // pred_region
      %s30 = ssub.s32 2048, 2048
      %31 = vsyncadd [#allocation3], %s30
      %s32 = sshll.u32 [#allocation2], 4
      %s33 = int_to_ptr.vmem [resolvable:$true] %s32
      %38 = dma.hbm_to_vmem [thread:$0]  %s0, 2048, %s33, [#allocation3], 64, 64, 4
    $region5: #{tpu_custom_call.1} parent=1 // pred_fallthru
      _
    // Predicated region
    $region6: #{tpu_custom_call.1} parent=1 // pred_check
      _
    $region7: #{tpu_custom_call.1} parent=1 // pred_check_branch
      %40 = sbr.rel (0) target = $region9
    $region8: #{tpu_custom_call.1} parent=1 // pred_region
      %s42 = ssub.s32 4096, 4096
      %43 = vsyncadd [#allocation6], %s42
      %s44 = sshll.u32 [#allocation5], 4
      %s45 = int_to_ptr.vmem [resolvable:$true] %s44
      %50 = dma.hbm_to_vmem [thread:$0]  %s1, 4096, %s45, [#allocation6], 256, 256, 16
    $region9: #{tpu_custom_call.1} parent=1 // pred_fallthru
      _
    // Predicated region
    $region10: #{tpu_custom_call.1} parent=1 // pred_check
      _
    $region11: #{tpu_custom_call.1} parent=1 // pred_check_branch
      %52 = sbr.rel (0) target = $region13
    $region12: #{tpu_custom_call.1} parent=1 // pred_region
      _
    $region13: #{tpu_custom_call.1} parent=1 // pred_fallthru
      _
    // Predicated region
    $region14: #{tpu_custom_call.1} parent=1 // pred_check
      _
    $region15: #{tpu_custom_call.1} parent=1 // pred_check_branch
      %54 = sbr.rel (0) target = $region17
    $region16: #{tpu_custom_call.1} parent=1 // pred_region
      %s56 = ssub.s32 1024, 1024
      %57 = vsyncadd [#allocation6], %s56
      %s58 = sshll.u32 [#allocation7], 4
      %s59 = int_to_ptr.vmem [resolvable:$true] %s58
      %64 = dma.hbm_to_vmem [thread:$0]  %s3, 1024, %s59, [#allocation6], 64, 64, 4
    $region17: #{tpu_custom_call.1} parent=1 // pred_fallthru
      _
    // Predicated region
    $region18: #{tpu_custom_call.1} parent=1 // pred_check
      _
    $region19: #{tpu_custom_call.1} parent=1 // pred_check_branch
      %66 = sbr.rel (0) target = $region21
    $region20: #{tpu_custom_call.1} parent=1 // pred_region
      %s68 = ssub.s32 1024, 1024
      %69 = vsyncadd [#allocation9], %s68
      %s70 = sshll.u32 [#allocation8], 4
      %s71 = int_to_ptr.vmem [resolvable:$true] %s70
      %76 = dma.hbm_to_vmem [thread:$0]  %s4, 1024, %s71, [#allocation9], 64, 64, 4
    $region21: #{tpu_custom_call.1} parent=1 // pred_fallthru
      _
    // Predicated region
    $region22: #{tpu_custom_call.1} parent=1 // pred_check
      _
    $region23: #{tpu_custom_call.1} parent=1 // pred_check_branch
      %78 = sbr.rel (0) target = $region25
    $region24: #{tpu_custom_call.1} parent=1 // pred_region
      %s80 = ssub.s32 1024, 1024
      %81 = vsyncadd [#allocation9], %s80
      %s82 = sshll.u32 [#allocation10], 4
      %s83 = int_to_ptr.vmem [resolvable:$true] %s82
      %88 = dma.hbm_to_vmem [thread:$0]  %s5, 1024, %s83, [#allocation9], 64, 64, 4
    $region25: #{tpu_custom_call.1} parent=1 // pred_fallthru
      _
    // Predicated region
    $region26: #{tpu_custom_call.1} parent=1 // pred_check
      _
    $region27: #{tpu_custom_call.1} parent=1 // pred_check_branch
      %90 = sbr.rel (0) target = $region29
    $region28: #{tpu_custom_call.1} parent=1 // pred_region
      %s92 = ssub.s32 1024, 1024
      %93 = vsyncadd [#allocation12], %s92
      %s94 = sshll.u32 [#allocation11], 4
      %s95 = int_to_ptr.vmem [resolvable:$true] %s94
      %100 = dma.hbm_to_vmem [thread:$0]  %s6, 1024, %s95, [#allocation12], 64, 64, 4
    $region29: #{tpu_custom_call.1} parent=1 // pred_fallthru
      _
    // Predicated region
    $region30: #{tpu_custom_call.1} parent=1 // pred_check
      _
    $region31: #{tpu_custom_call.1} parent=1 // pred_check_branch
      %102 = sbr.rel (0) target = $region33
    $region32: #{tpu_custom_call.1} parent=1 // pred_region
      _
    $region33: #{tpu_custom_call.1} parent=1 // pred_fallthru
      _
    // Predicated region
    $region34: #{tpu_custom_call.1} parent=1 // pred_check
      _
    $region35: #{tpu_custom_call.1} parent=1 // pred_check_branch
      %104 = sbr.rel (0) target = $region37
    $region36: #{tpu_custom_call.1} parent=1 // pred_region
      _
    $region37: #{tpu_custom_call.1} parent=1 // pred_fallthru
      _
    // Predicated region
    $region38: #{tpu_custom_call.1} parent=1 // pred_check
      _
    $region39: #{tpu_custom_call.1} parent=1 // pred_check_branch
      %106 = sbr.rel (0) target = $region41
    $region40: #{tpu_custom_call.1} parent=1 // pred_region
      _
    $region41: #{tpu_custom_call.1} parent=1 // pred_fallthru
      _
    // Predicated region
    $region42: #{tpu_custom_call.1} parent=1 // pred_check
      _
    $region43: #{tpu_custom_call.1} parent=1 // pred_check_branch
      %108 = sbr.rel (0) target = $region45
    $region44: #{tpu_custom_call.1} parent=1 // pred_region
      _
    $region45: #{tpu_custom_call.1} parent=1 // pred_fallthru
      _
    // Predicated region
    $region46: #{tpu_custom_call.1} parent=1 // pred_check
      _
    $region47: #{tpu_custom_call.1} parent=1 // pred_check_branch
      %110 = sbr.rel (0) target = $region49
    $region48: #{tpu_custom_call.1} parent=1 // pred_region
      %111 = dma.done [#allocation3], 2048
    $region49: #{tpu_custom_call.1} parent=1 // pred_fallthru
      _
    // Predicated region
    $region50: #{tpu_custom_call.1} parent=1 // pred_check
      _
    $region51: #{tpu_custom_call.1} parent=1 // pred_check_branch
      %113 = sbr.rel (0) target = $region53
    $region52: #{tpu_custom_call.1} parent=1 // pred_region
      %114 = dma.done [#allocation6], 4096
    $region53: #{tpu_custom_call.1} parent=1 // pred_fallthru
      _
    // Predicated region
    $region54: #{tpu_custom_call.1} parent=1 // pred_check
      _
    $region55: #{tpu_custom_call.1} parent=1 // pred_check_branch
      %116 = sbr.rel (0) target = $region57
    $region56: #{tpu_custom_call.1} parent=1 // pred_region
      %117 = dma.done [#allocation6], 1024
    $region57: #{tpu_custom_call.1} parent=1 // pred_fallthru
      _
    // Predicated region
    $region58: #{tpu_custom_call.1} parent=1 // pred_check
      _
    $region59: #{tpu_custom_call.1} parent=1 // pred_check_branch
      %119 = sbr.rel (0) target = $region61
    $region60: #{tpu_custom_call.1} parent=1 // pred_region
      %120 = dma.done [#allocation9], 1024
    $region61: #{tpu_custom_call.1} parent=1 // pred_fallthru
      _
    // Predicated region
    $region62: #{tpu_custom_call.1} parent=1 // pred_check
      _
    $region63: #{tpu_custom_call.1} parent=1 // pred_check_branch
      %122 = sbr.rel (0) target = $region65
    $region64: #{tpu_custom_call.1} parent=1 // pred_region
      %123 = dma.done [#allocation9], 1024
    $region65: #{tpu_custom_call.1} parent=1 // pred_fallthru
      _
    // Predicated region
    $region66: #{tpu_custom_call.1} parent=1 // pred_check
      _
    $region67: #{tpu_custom_call.1} parent=1 // pred_check_branch
      %125 = sbr.rel (0) target = $region69
    $region68: #{tpu_custom_call.1} parent=1 // pred_region
      %126 = dma.done [#allocation12], 1024
    $region69: #{tpu_custom_call.1} parent=1 // pred_fallthru
      _
    %v128 = vld [vmem:[#allocation2] sm:$0xf]
    %v129 = vld [vmem:[#allocation2 + $0x4] sm:$0xf]
    %v130 = vld [vmem:[#allocation2 + $0x8] sm:$0xf]
    %v131 = vld [vmem:[#allocation2 + $0xc] sm:$0xf]
    %v132 = vld [vmem:[#allocation2 + $0x10] sm:$0xf]
    %v133 = vld [vmem:[#allocation2 + $0x14] sm:$0xf]
    %v134 = vld [vmem:[#allocation2 + $0x18] sm:$0xf]
    %v135 = vld [vmem:[#allocation2 + $0x1c] sm:$0xf]
    %v136 = vld [vmem:[#allocation2 + $0x20] sm:$0xf]
    %v137 = vld [vmem:[#allocation2 + $0x24] sm:$0xf]
    %v138 = vld [vmem:[#allocation2 + $0x28] sm:$0xf]
    %v139 = vld [vmem:[#allocation2 + $0x2c] sm:$0xf]
    %v140 = vld [vmem:[#allocation2 + $0x30] sm:$0xf]
    %v141 = vld [vmem:[#allocation2 + $0x34] sm:$0xf]
    %v142 = vld [vmem:[#allocation2 + $0x38] sm:$0xf]
    %v143 = vld [vmem:[#allocation2 + $0x3c] sm:$0xf]
    %v144 = vld [vmem:[#allocation2 + $0x40] sm:$0xf]
    %v145 = vld [vmem:[#allocation2 + $0x44] sm:$0xf]
    %v146 = vld [vmem:[#allocation2 + $0x48] sm:$0xf]
    %v147 = vld [vmem:[#allocation2 + $0x4c] sm:$0xf]
    %v148 = vld [vmem:[#allocation2 + $0x50] sm:$0xf]
    %v149 = vld [vmem:[#allocation2 + $0x54] sm:$0xf]
    %v150 = vld [vmem:[#allocation2 + $0x58] sm:$0xf]
    %v151 = vld [vmem:[#allocation2 + $0x5c] sm:$0xf]
    %v152 = vld [vmem:[#allocation2 + $0x60] sm:$0xf]
    %v153 = vld [vmem:[#allocation2 + $0x64] sm:$0xf]
    %v154 = vld [vmem:[#allocation2 + $0x68] sm:$0xf]
    %v155 = vld [vmem:[#allocation2 + $0x6c] sm:$0xf]
    %v156 = vld [vmem:[#allocation2 + $0x70] sm:$0xf]
    %v157 = vld [vmem:[#allocation2 + $0x74] sm:$0xf]
    %v158 = vld [vmem:[#allocation2 + $0x78] sm:$0xf]
    %v159 = vld [vmem:[#allocation2 + $0x7c] sm:$0xf]
    %v160 = vld [vmem:[#allocation5] sm:$0xff]
    %v161 = vld [vmem:[#allocation5 + $0x8] sm:$0xff]
    %v162 = vld [vmem:[#allocation5 + $0x10] sm:$0xff]
    %v163 = vld [vmem:[#allocation5 + $0x18] sm:$0xff]
    %v164 = vld [vmem:[#allocation5 + $0x20] sm:$0xff]
    %v165 = vld [vmem:[#allocation5 + $0x28] sm:$0xff]
    %v166 = vld [vmem:[#allocation5 + $0x30] sm:$0xff]
    %v167 = vld [vmem:[#allocation5 + $0x38] sm:$0xff]
    %v168 = vld [vmem:[#allocation5 + $0x40] sm:$0xff]
    %v169 = vld [vmem:[#allocation5 + $0x48] sm:$0xff]
    %v170 = vld [vmem:[#allocation5 + $0x50] sm:$0xff]
    %v171 = vld [vmem:[#allocation5 + $0x58] sm:$0xff]
    %v172 = vld [vmem:[#allocation5 + $0x60] sm:$0xff]
    %v173 = vld [vmem:[#allocation5 + $0x68] sm:$0xff]
    %v174 = vld [vmem:[#allocation5 + $0x70] sm:$0xff]
    %v175 = vld [vmem:[#allocation5 + $0x78] sm:$0xff]
    %v176 = vld [vmem:[#allocation5 + $0x80] sm:$0xff]
    %v177 = vld [vmem:[#allocation5 + $0x88] sm:$0xff]
    %v178 = vld [vmem:[#allocation5 + $0x90] sm:$0xff]
    %v179 = vld [vmem:[#allocation5 + $0x98] sm:$0xff]
    %v180 = vld [vmem:[#allocation5 + $0xa0] sm:$0xff]
    %v181 = vld [vmem:[#allocation5 + $0xa8] sm:$0xff]
    %v182 = vld [vmem:[#allocation5 + $0xb0] sm:$0xff]
    %v183 = vld [vmem:[#allocation5 + $0xb8] sm:$0xff]
    %v184 = vld [vmem:[#allocation5 + $0xc0] sm:$0xff]
    %v185 = vld [vmem:[#allocation5 + $0xc8] sm:$0xff]
    %v186 = vld [vmem:[#allocation5 + $0xd0] sm:$0xff]
    %v187 = vld [vmem:[#allocation5 + $0xd8] sm:$0xff]
    %v188 = vld [vmem:[#allocation5 + $0xe0] sm:$0xff]
    %v189 = vld [vmem:[#allocation5 + $0xe8] sm:$0xff]
    %v190 = vld [vmem:[#allocation5 + $0xf0] sm:$0xff]
    %v191 = vld [vmem:[#allocation5 + $0xf8] sm:$0xff]
    %v192 = vld [vmem:[%s2] sm:$0xf]
    %v194 = vlaneseq
    %v195 = vshrl.u32 %v194, 7
    %v196 = vsub.s32 0, %v195
    %v197 = vrot.slane %v192, %v196
    %v198 = vlaneseq
    %v199 = vshrl.u32 %v198, 7
    %v200 = vsub.s32 1, %v199
    %v201 = vrot.slane %v192, %v200
    %v202 = vlaneseq
    %v203 = vshrl.u32 %v202, 7
    %v204 = vsub.s32 2, %v203
    %v205 = vrot.slane %v192, %v204
    %v206 = vlaneseq
    %v207 = vshrl.u32 %v206, 7
    %v208 = vsub.s32 3, %v207
    %v209 = vrot.slane %v192, %v208
    %v246 = vunpack.c.l.b16 %v128
    %v247 = vunpack.c.l.b16 %v129
    %v248 = vunpack.c.l.b16 %v130
    %v249 = vunpack.c.l.b16 %v131
    %v250 = vunpack.c.l.b16 %v132
    %v251 = vunpack.c.l.b16 %v133
    %v252 = vunpack.c.l.b16 %v134
    %v253 = vunpack.c.l.b16 %v135
    %v254 = vunpack.c.l.b16 %v136
    %v255 = vunpack.c.l.b16 %v137
    %v256 = vunpack.c.l.b16 %v138
    %v257 = vunpack.c.l.b16 %v139
    %v258 = vunpack.c.l.b16 %v140
    %v259 = vunpack.c.l.b16 %v141
    %v260 = vunpack.c.l.b16 %v142
    %v261 = vunpack.c.l.b16 %v143
    %v262 = vunpack.c.l.b16 %v144
    %v263 = vunpack.c.l.b16 %v145
    %v264 = vunpack.c.l.b16 %v146
    %v265 = vunpack.c.l.b16 %v147
    %v266 = vunpack.c.l.b16 %v148
    %v267 = vunpack.c.l.b16 %v149
    %v268 = vunpack.c.l.b16 %v150
    %v269 = vunpack.c.l.b16 %v151
    %v270 = vunpack.c.l.b16 %v152
    %v271 = vunpack.c.l.b16 %v153
    %v272 = vunpack.c.l.b16 %v154
    %v273 = vunpack.c.l.b16 %v155
    %v274 = vunpack.c.l.b16 %v156
    %v275 = vunpack.c.l.b16 %v157
    %v276 = vunpack.c.l.b16 %v158
    %v277 = vunpack.c.l.b16 %v159
    %v278 = vpack.c.b16 %v247, %v246
    %v279 = vpack.c.b16 %v249, %v248
    %v280 = vpack.c.b16 %v251, %v250
    %v281 = vpack.c.b16 %v253, %v252
    %v282 = vpack.c.b16 %v255, %v254
    %v283 = vpack.c.b16 %v257, %v256
    %v284 = vpack.c.b16 %v259, %v258
    %v285 = vpack.c.b16 %v261, %v260
    %v286 = vpack.c.b16 %v263, %v262
    %v287 = vpack.c.b16 %v265, %v264
    %v288 = vpack.c.b16 %v267, %v266
    %v289 = vpack.c.b16 %v269, %v268
    %v290 = vpack.c.b16 %v271, %v270
    %v291 = vpack.c.b16 %v273, %v272
    %v292 = vpack.c.b16 %v275, %v274
    %v293 = vpack.c.b16 %v277, %v276
    %v342 = vunpack.c.l.b16 %v160
    %v343 = vunpack.c.h.b16 %v160
    %v344 = vunpack.c.l.b16 %v161
    %v345 = vunpack.c.h.b16 %v161
    %v346 = vunpack.c.l.b16 %v162
    %v347 = vunpack.c.h.b16 %v162
    %v348 = vunpack.c.l.b16 %v163
    %v349 = vunpack.c.h.b16 %v163
    %v350 = vunpack.c.l.b16 %v164
    %v351 = vunpack.c.h.b16 %v164
    %v352 = vunpack.c.l.b16 %v165
    %v353 = vunpack.c.h.b16 %v165
    %v354 = vunpack.c.l.b16 %v166
    %v355 = vunpack.c.h.b16 %v166
    %v356 = vunpack.c.l.b16 %v167
    %v357 = vunpack.c.h.b16 %v167
    %v358 = vunpack.c.l.b16 %v168
    %v359 = vunpack.c.h.b16 %v168
    %v360 = vunpack.c.l.b16 %v169
    %v361 = vunpack.c.h.b16 %v169
    %v362 = vunpack.c.l.b16 %v170
    %v363 = vunpack.c.h.b16 %v170
    %v364 = vunpack.c.l.b16 %v171
    %v365 = vunpack.c.h.b16 %v171
    %v366 = vunpack.c.l.b16 %v172
    %v367 = vunpack.c.h.b16 %v172
    %v368 = vunpack.c.l.b16 %v173
    %v369 = vunpack.c.h.b16 %v173
    %v370 = vunpack.c.l.b16 %v174
    %v371 = vunpack.c.h.b16 %v174
    %v372 = vunpack.c.l.b16 %v175
    %v373 = vunpack.c.h.b16 %v175
    %v374 = vunpack.c.l.b16 %v176
    %v375 = vunpack.c.h.b16 %v176
    %v376 = vunpack.c.l.b16 %v177
    %v377 = vunpack.c.h.b16 %v177
    %v378 = vunpack.c.l.b16 %v178
    %v379 = vunpack.c.h.b16 %v178
    %v380 = vunpack.c.l.b16 %v179
    %v381 = vunpack.c.h.b16 %v179
    %v382 = vunpack.c.l.b16 %v180
    %v383 = vunpack.c.h.b16 %v180
    %v384 = vunpack.c.l.b16 %v181
    %v385 = vunpack.c.h.b16 %v181
    %v386 = vunpack.c.l.b16 %v182
    %v387 = vunpack.c.h.b16 %v182
    %v388 = vunpack.c.l.b16 %v183
    %v389 = vunpack.c.h.b16 %v183
    %v390 = vunpack.c.l.b16 %v184
    %v391 = vunpack.c.h.b16 %v184
    %v392 = vunpack.c.l.b16 %v185
    %v393 = vunpack.c.h.b16 %v185
    %v394 = vunpack.c.l.b16 %v186
    %v395 = vunpack.c.h.b16 %v186
    %v396 = vunpack.c.l.b16 %v187
    %v397 = vunpack.c.h.b16 %v187
    %v398 = vunpack.c.l.b16 %v188
    %v399 = vunpack.c.h.b16 %v188
    %v400 = vunpack.c.l.b16 %v189
    %v401 = vunpack.c.h.b16 %v189
    %v402 = vunpack.c.l.b16 %v190
    %v403 = vunpack.c.h.b16 %v190
    %v404 = vunpack.c.l.b16 %v191
    %v405 = vunpack.c.h.b16 %v191
    %v406 = vpack.c.b16 %v346, %v342
    %v407 = vpack.c.b16 %v347, %v343
    %v408 = vpack.c.b16 %v348, %v344
    %v409 = vpack.c.b16 %v349, %v345
    %v410 = vpack.c.b16 %v354, %v350
    %v411 = vpack.c.b16 %v355, %v351
    %v412 = vpack.c.b16 %v356, %v352
    %v413 = vpack.c.b16 %v357, %v353
    %v414 = vpack.c.b16 %v362, %v358
    %v415 = vpack.c.b16 %v363, %v359
    %v416 = vpack.c.b16 %v364, %v360
    %v417 = vpack.c.b16 %v365, %v361
    %v418 = vpack.c.b16 %v370, %v366
    %v419 = vpack.c.b16 %v371, %v367
    %v420 = vpack.c.b16 %v372, %v368
    %v421 = vpack.c.b16 %v373, %v369
    %v422 = vpack.c.b16 %v378, %v374
    %v423 = vpack.c.b16 %v379, %v375
    %v424 = vpack.c.b16 %v380, %v376
    %v425 = vpack.c.b16 %v381, %v377
    %v426 = vpack.c.b16 %v386, %v382
    %v427 = vpack.c.b16 %v387, %v383
    %v428 = vpack.c.b16 %v388, %v384
    %v429 = vpack.c.b16 %v389, %v385
    %v430 = vpack.c.b16 %v394, %v390
    %v431 = vpack.c.b16 %v395, %v391
    %v432 = vpack.c.b16 %v396, %v392
    %v433 = vpack.c.b16 %v397, %v393
    %v434 = vpack.c.b16 %v402, %v398
    %v435 = vpack.c.b16 %v403, %v399
    %v436 = vpack.c.b16 %v404, %v400
    %v437 = vpack.c.b16 %v405, %v401
    %470 = vmatprep.subr.bf16.mxu0 %v407
    %471 = vmatpush1.bf16.msra.mxu0 %v406
    %472 = vmatprep.subr.bf16.mxu0 %v411
    %473 = vmatpush1.bf16.msra.mxu0 %v410
    %474 = vmatprep.subr.bf16.mxu0 %v415
    %475 = vmatpush1.bf16.msra.mxu0 %v414
    %476 = vmatprep.subr.bf16.mxu0 %v419
    %477 = vmatpush1.bf16.msra.mxu0 %v418
    %478 = vmatprep.subr.bf16.mxu0 %v423
    %479 = vmatpush1.bf16.msra.mxu0 %v422
    %480 = vmatprep.subr.bf16.mxu0 %v427
    %481 = vmatpush1.bf16.msra.mxu0 %v426
    %482 = vmatprep.subr.bf16.mxu0 %v431
    %483 = vmatpush1.bf16.msra.mxu0 %v430
    %484 = vmatprep.subr.bf16.mxu0 %v435
    %485 = vmatpush1.bf16.msra.mxu0 %v434
    %486 = vmatprep.subr.bf16.mxu0 0
    %487 = vmatpush1.bf16.msra.mxu0 0
    %488 = vmatprep.subr.bf16.mxu0 0
    %489 = vmatpush1.bf16.msra.mxu0 0
    %490 = vmatprep.subr.bf16.mxu0 0
    %491 = vmatpush1.bf16.msra.mxu0 0
    %492 = vmatprep.subr.bf16.mxu0 0
    %493 = vmatpush1.bf16.msra.mxu0 0
    %494 = vmatprep.subr.bf16.mxu0 0
    %495 = vmatpush1.bf16.msra.mxu0 0
    %496 = vmatprep.subr.bf16.mxu0 0
    %497 = vmatpush1.bf16.msra.mxu0 0
    %498 = vmatprep.subr.bf16.mxu0 0
    %499 = vmatpush1.bf16.msra.mxu0 0
    %500 = vmatprep.subr.bf16.mxu0 0
    %501 = vmatpush1.bf16.msra.mxu0 0
    %502 = vmatprep.mubr.bf16.mxu0 0
    %503 = vmatmul.mubr.bf16.gmra.mrb[0].mxu0 %v278
    %v504 = vpop.f32.mrb[0].mxu0
    %v505 = vadd.f32 %v197, %v504
    %v506 = vpop.f32.mrb[0].mxu0
    %v507 = vadd.f32 %v201, %v506
    %v508 = vpop.f32.mrb[0].mxu0
    %v509 = vadd.f32 %v197, %v508
    %v510 = vpop.f32.mrb[0].mxu0
    %v511 = vadd.f32 %v201, %v510
    %512 = vmatprep.mubr.bf16.mxu0 0
    %513 = vmatmul.mubr.bf16.gmra.mrb[0].mxu0 %v279
    %v514 = vpop.f32.mrb[0].mxu0
    %v515 = vadd.f32 %v197, %v514
    %v516 = vpop.f32.mrb[0].mxu0
    %v517 = vadd.f32 %v201, %v516
    %v518 = vpop.f32.mrb[0].mxu0
    %v519 = vadd.f32 %v197, %v518
    %v520 = vpop.f32.mrb[0].mxu0
    %v521 = vadd.f32 %v201, %v520
    %522 = vmatprep.mubr.bf16.mxu0 0
    %523 = vmatmul.mubr.bf16.gmra.mrb[0].mxu0 %v280
    %v524 = vpop.f32.mrb[0].mxu0
    %v525 = vadd.f32 %v197, %v524
    %v526 = vpop.f32.mrb[0].mxu0
    %v527 = vadd.f32 %v201, %v526
    %v528 = vpop.f32.mrb[0].mxu0
    %v529 = vadd.f32 %v197, %v528
    %v530 = vpop.f32.mrb[0].mxu0
    %v531 = vadd.f32 %v201, %v530
    %532 = vmatprep.mubr.bf16.mxu0 0
    %533 = vmatmul.mubr.bf16.gmra.mrb[0].mxu0 %v281
    %v534 = vpop.f32.mrb[0].mxu0
    %v535 = vadd.f32 %v197, %v534
    %v536 = vpop.f32.mrb[0].mxu0
    %v537 = vadd.f32 %v201, %v536
    %v538 = vpop.f32.mrb[0].mxu0
    %v539 = vadd.f32 %v197, %v538
    %v540 = vpop.f32.mrb[0].mxu0
    %v541 = vadd.f32 %v201, %v540
    %542 = vmatprep.mubr.bf16.mxu0 0
    %543 = vmatmul.mubr.bf16.gmra.mrb[0].mxu0 %v282
    %v544 = vpop.f32.mrb[0].mxu0
    %v545 = vadd.f32 %v197, %v544
    %v546 = vpop.f32.mrb[0].mxu0
    %v547 = vadd.f32 %v201, %v546
    %v548 = vpop.f32.mrb[0].mxu0
    %v549 = vadd.f32 %v197, %v548
    %v550 = vpop.f32.mrb[0].mxu0
    %v551 = vadd.f32 %v201, %v550
    %552 = vmatprep.mubr.bf16.mxu0 0
    %553 = vmatmul.mubr.bf16.gmra.mrb[0].mxu0 %v283
    %v554 = vpop.f32.mrb[0].mxu0
    %v555 = vadd.f32 %v197, %v554
    %v556 = vpop.f32.mrb[0].mxu0
    %v557 = vadd.f32 %v201, %v556
    %v558 = vpop.f32.mrb[0].mxu0
    %v559 = vadd.f32 %v197, %v558
    %v560 = vpop.f32.mrb[0].mxu0
    %v561 = vadd.f32 %v201, %v560
    %562 = vmatprep.mubr.bf16.mxu0 0
    %563 = vmatmul.mubr.bf16.gmra.mrb[0].mxu0 %v284
    %v564 = vpop.f32.mrb[0].mxu0
    %v565 = vadd.f32 %v197, %v564
    %v566 = vpop.f32.mrb[0].mxu0
    %v567 = vadd.f32 %v201, %v566
    %v568 = vpop.f32.mrb[0].mxu0
    %v569 = vadd.f32 %v197, %v568
    %v570 = vpop.f32.mrb[0].mxu0
    %v571 = vadd.f32 %v201, %v570
    %572 = vmatprep.mubr.bf16.mxu0 0
    %573 = vmatmul.mubr.bf16.gmra.mrb[0].mxu0 %v285
    %v574 = vpop.f32.mrb[0].mxu0
    %v575 = vadd.f32 %v197, %v574
    %v576 = vpop.f32.mrb[0].mxu0
    %v577 = vadd.f32 %v201, %v576
    %v578 = vpop.f32.mrb[0].mxu0
    %v579 = vadd.f32 %v197, %v578
    %v580 = vpop.f32.mrb[0].mxu0
    %v581 = vadd.f32 %v201, %v580
    %582 = vmatprep.mubr.bf16.mxu0 0
    %583 = vmatmul.mubr.bf16.gmra.mrb[0].mxu0 %v286
    %v584 = vpop.f32.mrb[0].mxu0
    %v585 = vadd.f32 %v197, %v584
    %v586 = vpop.f32.mrb[0].mxu0
    %v587 = vadd.f32 %v201, %v586
    %v588 = vpop.f32.mrb[0].mxu0
    %v589 = vadd.f32 %v197, %v588
    %v590 = vpop.f32.mrb[0].mxu0
    %v591 = vadd.f32 %v201, %v590
    %592 = vmatprep.mubr.bf16.mxu0 0
    %593 = vmatmul.mubr.bf16.gmra.mrb[0].mxu0 %v287
    %v594 = vpop.f32.mrb[0].mxu0
    %v595 = vadd.f32 %v197, %v594
    %v596 = vpop.f32.mrb[0].mxu0
    %v597 = vadd.f32 %v201, %v596
    %v598 = vpop.f32.mrb[0].mxu0
    %v599 = vadd.f32 %v197, %v598
    %v600 = vpop.f32.mrb[0].mxu0
    %v601 = vadd.f32 %v201, %v600
    %602 = vmatprep.mubr.bf16.mxu0 0
    %603 = vmatmul.mubr.bf16.gmra.mrb[0].mxu0 %v288
    %v604 = vpop.f32.mrb[0].mxu0
    %v605 = vadd.f32 %v197, %v604
    %v606 = vpop.f32.mrb[0].mxu0
    %v607 = vadd.f32 %v201, %v606
    %v608 = vpop.f32.mrb[0].mxu0
    %v609 = vadd.f32 %v197, %v608
    %v610 = vpop.f32.mrb[0].mxu0
    %v611 = vadd.f32 %v201, %v610
    %612 = vmatprep.mubr.bf16.mxu0 0
    %613 = vmatmul.mubr.bf16.gmra.mrb[0].mxu0 %v289
    %v614 = vpop.f32.mrb[0].mxu0
    %v615 = vadd.f32 %v197, %v614
    %v616 = vpop.f32.mrb[0].mxu0
    %v617 = vadd.f32 %v201, %v616
    %v618 = vpop.f32.mrb[0].mxu0
    %v619 = vadd.f32 %v197, %v618
    %v620 = vpop.f32.mrb[0].mxu0
    %v621 = vadd.f32 %v201, %v620
    %622 = vmatprep.mubr.bf16.mxu0 0
    %623 = vmatmul.mubr.bf16.gmra.mrb[0].mxu0 %v290
    %v624 = vpop.f32.mrb[0].mxu0
    %v625 = vadd.f32 %v197, %v624
    %v626 = vpop.f32.mrb[0].mxu0
    %v627 = vadd.f32 %v201, %v626
    %v628 = vpop.f32.mrb[0].mxu0
    %v629 = vadd.f32 %v197, %v628
    %v630 = vpop.f32.mrb[0].mxu0
    %v631 = vadd.f32 %v201, %v630
    %632 = vmatprep.mubr.bf16.mxu0 0
    %633 = vmatmul.mubr.bf16.gmra.mrb[0].mxu0 %v291
    %v634 = vpop.f32.mrb[0].mxu0
    %v635 = vadd.f32 %v197, %v634
    %v636 = vpop.f32.mrb[0].mxu0
    %v637 = vadd.f32 %v201, %v636
    %v638 = vpop.f32.mrb[0].mxu0
    %v639 = vadd.f32 %v197, %v638
    %v640 = vpop.f32.mrb[0].mxu0
    %v641 = vadd.f32 %v201, %v640
    %642 = vmatprep.mubr.bf16.mxu0 0
    %643 = vmatmul.mubr.bf16.gmra.mrb[0].mxu0 %v292
    %v644 = vpop.f32.mrb[0].mxu0
    %v645 = vadd.f32 %v197, %v644
    %v646 = vpop.f32.mrb[0].mxu0
    %v647 = vadd.f32 %v201, %v646
    %v648 = vpop.f32.mrb[0].mxu0
    %v649 = vadd.f32 %v197, %v648
    %v650 = vpop.f32.mrb[0].mxu0
    %v651 = vadd.f32 %v201, %v650
    %652 = vmatprep.mubr.bf16.mxu0 0
    %653 = vmatmul.mubr.bf16.gmra.mrb[0].mxu0 %v293
    %v654 = vpop.f32.mrb[0].mxu0
    %v655 = vadd.f32 %v197, %v654
    %v656 = vpop.f32.mrb[0].mxu0
    %v657 = vadd.f32 %v201, %v656
    %v658 = vpop.f32.mrb[0].mxu0
    %v659 = vadd.f32 %v197, %v658
    %v660 = vpop.f32.mrb[0].mxu0
    %v661 = vadd.f32 %v201, %v660
    %662 = vdwg.mxu0
    %663 = vmatprep.subr.bf16.mxu0 %v409
    %664 = vmatpush1.bf16.msra.mxu0 %v408
    %665 = vmatprep.subr.bf16.mxu0 %v413
    %666 = vmatpush1.bf16.msra.mxu0 %v412
    %667 = vmatprep.subr.bf16.mxu0 %v417
    %668 = vmatpush1.bf16.msra.mxu0 %v416
    %669 = vmatprep.subr.bf16.mxu0 %v421
    %670 = vmatpush1.bf16.msra.mxu0 %v420
    %671 = vmatprep.subr.bf16.mxu0 %v425
    %672 = vmatpush1.bf16.msra.mxu0 %v424
    %673 = vmatprep.subr.bf16.mxu0 %v429
    %674 = vmatpush1.bf16.msra.mxu0 %v428
    %675 = vmatprep.subr.bf16.mxu0 %v433
    %676 = vmatpush1.bf16.msra.mxu0 %v432
    %677 = vmatprep.subr.bf16.mxu0 %v437
    %678 = vmatpush1.bf16.msra.mxu0 %v436
    %679 = vmatprep.subr.bf16.mxu0 0
    %680 = vmatpush1.bf16.msra.mxu0 0
    %681 = vmatprep.subr.bf16.mxu0 0
    %682 = vmatpush1.bf16.msra.mxu0 0
    %683 = vmatprep.subr.bf16.mxu0 0
    %684 = vmatpush1.bf16.msra.mxu0 0
    %685 = vmatprep.subr.bf16.mxu0 0
    %686 = vmatpush1.bf16.msra.mxu0 0
    %687 = vmatprep.subr.bf16.mxu0 0
    %688 = vmatpush1.bf16.msra.mxu0 0
    %689 = vmatprep.subr.bf16.mxu0 0
    %690 = vmatpush1.bf16.msra.mxu0 0
    %691 = vmatprep.subr.bf16.mxu0 0
    %692 = vmatpush1.bf16.msra.mxu0 0
    %693 = vmatprep.subr.bf16.mxu0 0
    %694 = vmatpush1.bf16.msra.mxu0 0
    %695 = vmatprep.mubr.bf16.mxu0 0
    %696 = vmatmul.mubr.bf16.gmra.mrb[0].mxu0 %v278
    %v697 = vpop.f32.mrb[0].mxu0
    %v698 = vadd.f32 %v205, %v697
    %v699 = vpop.f32.mrb[0].mxu0
    %v700 = vadd.f32 %v209, %v699
    %v701 = vpop.f32.mrb[0].mxu0
    %v702 = vadd.f32 %v205, %v701
    %v703 = vpop.f32.mrb[0].mxu0
    %v704 = vadd.f32 %v209, %v703
    %705 = vmatprep.mubr.bf16.mxu0 0
    %706 = vmatmul.mubr.bf16.gmra.mrb[0].mxu0 %v279
    %v707 = vpop.f32.mrb[0].mxu0
    %v708 = vadd.f32 %v205, %v707
    %v709 = vpop.f32.mrb[0].mxu0
    %v710 = vadd.f32 %v209, %v709
    %v711 = vpop.f32.mrb[0].mxu0
    %v712 = vadd.f32 %v205, %v711
    %v713 = vpop.f32.mrb[0].mxu0
    %v714 = vadd.f32 %v209, %v713
    %715 = vmatprep.mubr.bf16.mxu0 0
    %716 = vmatmul.mubr.bf16.gmra.mrb[0].mxu0 %v280
    %v717 = vpop.f32.mrb[0].mxu0
    %v718 = vadd.f32 %v205, %v717
    %v719 = vpop.f32.mrb[0].mxu0
    %v720 = vadd.f32 %v209, %v719
    %v721 = vpop.f32.mrb[0].mxu0
    %v722 = vadd.f32 %v205, %v721
    %v723 = vpop.f32.mrb[0].mxu0
    %v724 = vadd.f32 %v209, %v723
    %725 = vmatprep.mubr.bf16.mxu0 0
    %726 = vmatmul.mubr.bf16.gmra.mrb[0].mxu0 %v281
    %v727 = vpop.f32.mrb[0].mxu0
    %v728 = vadd.f32 %v205, %v727
    %v729 = vpop.f32.mrb[0].mxu0
    %v730 = vadd.f32 %v209, %v729
    %v731 = vpop.f32.mrb[0].mxu0
    %v732 = vadd.f32 %v205, %v731
    %v733 = vpop.f32.mrb[0].mxu0
    %v734 = vadd.f32 %v209, %v733
    %735 = vmatprep.mubr.bf16.mxu0 0
    %736 = vmatmul.mubr.bf16.gmra.mrb[0].mxu0 %v282
    %v737 = vpop.f32.mrb[0].mxu0
    %v738 = vadd.f32 %v205, %v737
    %v739 = vpop.f32.mrb[0].mxu0
    %v740 = vadd.f32 %v209, %v739
    %v741 = vpop.f32.mrb[0].mxu0
    %v742 = vadd.f32 %v205, %v741
    %v743 = vpop.f32.mrb[0].mxu0
    %v744 = vadd.f32 %v209, %v743
    %745 = vmatprep.mubr.bf16.mxu0 0
    %746 = vmatmul.mubr.bf16.gmra.mrb[0].mxu0 %v283
    %v747 = vpop.f32.mrb[0].mxu0
    %v748 = vadd.f32 %v205, %v747
    %v749 = vpop.f32.mrb[0].mxu0
    %v750 = vadd.f32 %v209, %v749
    %v751 = vpop.f32.mrb[0].mxu0
    %v752 = vadd.f32 %v205, %v751
    %v753 = vpop.f32.mrb[0].mxu0
    %v754 = vadd.f32 %v209, %v753
    %755 = vmatprep.mubr.bf16.mxu0 0
    %756 = vmatmul.mubr.bf16.gmra.mrb[0].mxu0 %v284
    %v757 = vpop.f32.mrb[0].mxu0
    %v758 = vadd.f32 %v205, %v757
    %v759 = vpop.f32.mrb[0].mxu0
    %v760 = vadd.f32 %v209, %v759
    %v761 = vpop.f32.mrb[0].mxu0
    %v762 = vadd.f32 %v205, %v761
    %v763 = vpop.f32.mrb[0].mxu0
    %v764 = vadd.f32 %v209, %v763
    %765 = vmatprep.mubr.bf16.mxu0 0
    %766 = vmatmul.mubr.bf16.gmra.mrb[0].mxu0 %v285
    %v767 = vpop.f32.mrb[0].mxu0
    %v768 = vadd.f32 %v205, %v767
    %v769 = vpop.f32.mrb[0].mxu0
    %v770 = vadd.f32 %v209, %v769
    %v771 = vpop.f32.mrb[0].mxu0
    %v772 = vadd.f32 %v205, %v771
    %v773 = vpop.f32.mrb[0].mxu0
    %v774 = vadd.f32 %v209, %v773
    %775 = vmatprep.mubr.bf16.mxu0 0
    %776 = vmatmul.mubr.bf16.gmra.mrb[0].mxu0 %v286
    %v777 = vpop.f32.mrb[0].mxu0
    %v778 = vadd.f32 %v205, %v777
    %v779 = vpop.f32.mrb[0].mxu0
    %v780 = vadd.f32 %v209, %v779
    %v781 = vpop.f32.mrb[0].mxu0
    %v782 = vadd.f32 %v205, %v781
    %v783 = vpop.f32.mrb[0].mxu0
    %v784 = vadd.f32 %v209, %v783
    %785 = vmatprep.mubr.bf16.mxu0 0
    %786 = vmatmul.mubr.bf16.gmra.mrb[0].mxu0 %v287
    %v787 = vpop.f32.mrb[0].mxu0
    %v788 = vadd.f32 %v205, %v787
    %v789 = vpop.f32.mrb[0].mxu0
    %v790 = vadd.f32 %v209, %v789
    %v791 = vpop.f32.mrb[0].mxu0
    %v792 = vadd.f32 %v205, %v791
    %v793 = vpop.f32.mrb[0].mxu0
    %v794 = vadd.f32 %v209, %v793
    %795 = vmatprep.mubr.bf16.mxu0 0
    %796 = vmatmul.mubr.bf16.gmra.mrb[0].mxu0 %v288
    %v797 = vpop.f32.mrb[0].mxu0
    %v798 = vadd.f32 %v205, %v797
    %v799 = vpop.f32.mrb[0].mxu0
    %v800 = vadd.f32 %v209, %v799
    %v801 = vpop.f32.mrb[0].mxu0
    %v802 = vadd.f32 %v205, %v801
    %v803 = vpop.f32.mrb[0].mxu0
    %v804 = vadd.f32 %v209, %v803
    %805 = vmatprep.mubr.bf16.mxu0 0
    %806 = vmatmul.mubr.bf16.gmra.mrb[0].mxu0 %v289
    %v807 = vpop.f32.mrb[0].mxu0
    %v808 = vadd.f32 %v205, %v807
    %v809 = vpop.f32.mrb[0].mxu0
    %v810 = vadd.f32 %v209, %v809
    %v811 = vpop.f32.mrb[0].mxu0
    %v812 = vadd.f32 %v205, %v811
    %v813 = vpop.f32.mrb[0].mxu0
    %v814 = vadd.f32 %v209, %v813
    %815 = vmatprep.mubr.bf16.mxu0 0
    %816 = vmatmul.mubr.bf16.gmra.mrb[0].mxu0 %v290
    %v817 = vpop.f32.mrb[0].mxu0
    %v818 = vadd.f32 %v205, %v817
    %v819 = vpop.f32.mrb[0].mxu0
    %v820 = vadd.f32 %v209, %v819
    %v821 = vpop.f32.mrb[0].mxu0
    %v822 = vadd.f32 %v205, %v821
    %v823 = vpop.f32.mrb[0].mxu0
    %v824 = vadd.f32 %v209, %v823
    %825 = vmatprep.mubr.bf16.mxu0 0
    %826 = vmatmul.mubr.bf16.gmra.mrb[0].mxu0 %v291
    %v827 = vpop.f32.mrb[0].mxu0
    %v828 = vadd.f32 %v205, %v827
    %v829 = vpop.f32.mrb[0].mxu0
    %v830 = vadd.f32 %v209, %v829
    %v831 = vpop.f32.mrb[0].mxu0
    %v832 = vadd.f32 %v205, %v831
    %v833 = vpop.f32.mrb[0].mxu0
    %v834 = vadd.f32 %v209, %v833
    %835 = vmatprep.mubr.bf16.mxu0 0
    %836 = vmatmul.mubr.bf16.gmra.mrb[0].mxu0 %v292
    %v837 = vpop.f32.mrb[0].mxu0
    %v838 = vadd.f32 %v205, %v837
    %v839 = vpop.f32.mrb[0].mxu0
    %v840 = vadd.f32 %v209, %v839
    %v841 = vpop.f32.mrb[0].mxu0
    %v842 = vadd.f32 %v205, %v841
    %v843 = vpop.f32.mrb[0].mxu0
    %v844 = vadd.f32 %v209, %v843
    %845 = vmatprep.mubr.bf16.mxu0 0
    %846 = vmatmul.mubr.bf16.gmra.mrb[0].mxu0 %v293
    %v847 = vpop.f32.mrb[0].mxu0
    %v848 = vadd.f32 %v205, %v847
    %v849 = vpop.f32.mrb[0].mxu0
    %v850 = vadd.f32 %v209, %v849
    %v851 = vpop.f32.mrb[0].mxu0
    %v852 = vadd.f32 %v205, %v851
    %v853 = vpop.f32.mrb[0].mxu0
    %v854 = vadd.f32 %v209, %v853
    %855 = vdwg.mxu0
    %v856 = vmax.f32 %v505, 0.0
    %v857 = vmax.f32 %v507, 0.0
    %v858 = vmax.f32 %v698, 0.0
    %v859 = vmax.f32 %v700, 0.0
    %v860 = vmax.f32 %v509, 0.0
    %v861 = vmax.f32 %v511, 0.0
    %v862 = vmax.f32 %v702, 0.0
    %v863 = vmax.f32 %v704, 0.0
    %v864 = vmax.f32 %v515, 0.0
    %v865 = vmax.f32 %v517, 0.0
    %v866 = vmax.f32 %v708, 0.0
    %v867 = vmax.f32 %v710, 0.0
    %v868 = vmax.f32 %v519, 0.0
    %v869 = vmax.f32 %v521, 0.0
    %v870 = vmax.f32 %v712, 0.0
    %v871 = vmax.f32 %v714, 0.0
    %v872 = vmax.f32 %v525, 0.0
    %v873 = vmax.f32 %v527, 0.0
    %v874 = vmax.f32 %v718, 0.0
    %v875 = vmax.f32 %v720, 0.0
    %v876 = vmax.f32 %v529, 0.0
    %v877 = vmax.f32 %v531, 0.0
    %v878 = vmax.f32 %v722, 0.0
    %v879 = vmax.f32 %v724, 0.0
    %v880 = vmax.f32 %v535, 0.0
    %v881 = vmax.f32 %v537, 0.0
    %v882 = vmax.f32 %v728, 0.0
    %v883 = vmax.f32 %v730, 0.0
    %v884 = vmax.f32 %v539, 0.0
    %v885 = vmax.f32 %v541, 0.0
    %v886 = vmax.f32 %v732, 0.0
    %v887 = vmax.f32 %v734, 0.0
    %v888 = vmax.f32 %v545, 0.0
    %v889 = vmax.f32 %v547, 0.0
    %v890 = vmax.f32 %v738, 0.0
    %v891 = vmax.f32 %v740, 0.0
    %v892 = vmax.f32 %v549, 0.0
    %v893 = vmax.f32 %v551, 0.0
    %v894 = vmax.f32 %v742, 0.0
    %v895 = vmax.f32 %v744, 0.0
    %v896 = vmax.f32 %v555, 0.0
    %v897 = vmax.f32 %v557, 0.0
    %v898 = vmax.f32 %v748, 0.0
    %v899 = vmax.f32 %v750, 0.0
    %v900 = vmax.f32 %v559, 0.0
    %v901 = vmax.f32 %v561, 0.0
    %v902 = vmax.f32 %v752, 0.0
    %v903 = vmax.f32 %v754, 0.0
    %v904 = vmax.f32 %v565, 0.0
    %v905 = vmax.f32 %v567, 0.0
    %v906 = vmax.f32 %v758, 0.0
    %v907 = vmax.f32 %v760, 0.0
    %v908 = vmax.f32 %v569, 0.0
    %v909 = vmax.f32 %v571, 0.0
    %v910 = vmax.f32 %v762, 0.0
    %v911 = vmax.f32 %v764, 0.0
    %v912 = vmax.f32 %v575, 0.0
    %v913 = vmax.f32 %v577, 0.0
    %v914 = vmax.f32 %v768, 0.0
    %v915 = vmax.f32 %v770, 0.0
    %v916 = vmax.f32 %v579, 0.0
    %v917 = vmax.f32 %v581, 0.0
    %v918 = vmax.f32 %v772, 0.0
    %v919 = vmax.f32 %v774, 0.0
    %v920 = vmax.f32 %v585, 0.0
    %v921 = vmax.f32 %v587, 0.0
    %v922 = vmax.f32 %v778, 0.0
    %v923 = vmax.f32 %v780, 0.0
    %v924 = vmax.f32 %v589, 0.0
    %v925 = vmax.f32 %v591, 0.0
    %v926 = vmax.f32 %v782, 0.0
    %v927 = vmax.f32 %v784, 0.0
    %v928 = vmax.f32 %v595, 0.0
    %v929 = vmax.f32 %v597, 0.0
    %v930 = vmax.f32 %v788, 0.0
    %v931 = vmax.f32 %v790, 0.0
    %v932 = vmax.f32 %v599, 0.0
    %v933 = vmax.f32 %v601, 0.0
    %v934 = vmax.f32 %v792, 0.0
    %v935 = vmax.f32 %v794, 0.0
    %v936 = vmax.f32 %v605, 0.0
    %v937 = vmax.f32 %v607, 0.0
    %v938 = vmax.f32 %v798, 0.0
    %v939 = vmax.f32 %v800, 0.0
    %v940 = vmax.f32 %v609, 0.0
    %v941 = vmax.f32 %v611, 0.0
    %v942 = vmax.f32 %v802, 0.0
    %v943 = vmax.f32 %v804, 0.0
    %v944 = vmax.f32 %v615, 0.0
    %v945 = vmax.f32 %v617, 0.0
    %v946 = vmax.f32 %v808, 0.0
    %v947 = vmax.f32 %v810, 0.0
    %v948 = vmax.f32 %v619, 0.0
    %v949 = vmax.f32 %v621, 0.0
    %v950 = vmax.f32 %v812, 0.0
    %v951 = vmax.f32 %v814, 0.0
    %v952 = vmax.f32 %v625, 0.0
    %v953 = vmax.f32 %v627, 0.0
    %v954 = vmax.f32 %v818, 0.0
    %v955 = vmax.f32 %v820, 0.0
    %v956 = vmax.f32 %v629, 0.0
    %v957 = vmax.f32 %v631, 0.0
    %v958 = vmax.f32 %v822, 0.0
    %v959 = vmax.f32 %v824, 0.0
    %v960 = vmax.f32 %v635, 0.0
    %v961 = vmax.f32 %v637, 0.0
    %v962 = vmax.f32 %v828, 0.0
    %v963 = vmax.f32 %v830, 0.0
    %v964 = vmax.f32 %v639, 0.0
    %v965 = vmax.f32 %v641, 0.0
    %v966 = vmax.f32 %v832, 0.0
    %v967 = vmax.f32 %v834, 0.0
    %v968 = vmax.f32 %v645, 0.0
    %v969 = vmax.f32 %v647, 0.0
    %v970 = vmax.f32 %v838, 0.0
    %v971 = vmax.f32 %v840, 0.0
    %v972 = vmax.f32 %v649, 0.0
    %v973 = vmax.f32 %v651, 0.0
    %v974 = vmax.f32 %v842, 0.0
    %v975 = vmax.f32 %v844, 0.0
    %v976 = vmax.f32 %v655, 0.0
    %v977 = vmax.f32 %v657, 0.0
    %v978 = vmax.f32 %v848, 0.0
    %v979 = vmax.f32 %v850, 0.0
    %v980 = vmax.f32 %v659, 0.0
    %v981 = vmax.f32 %v661, 0.0
    %v982 = vmax.f32 %v852, 0.0
    %v983 = vmax.f32 %v854, 0.0
    %v984 = vpack.c.bf16 %v860, %v856
    %v985 = vpack.c.bf16 %v861, %v857
    %v986 = vpack.c.bf16 %v862, %v858
    %v987 = vpack.c.bf16 %v863, %v859
    %v988 = vpack.c.bf16 %v868, %v864
    %v989 = vpack.c.bf16 %v869, %v865
    %v990 = vpack.c.bf16 %v870, %v866
    %v991 = vpack.c.bf16 %v871, %v867
    %v992 = vpack.c.bf16 %v876, %v872
    %v993 = vpack.c.bf16 %v877, %v873
    %v994 = vpack.c.bf16 %v878, %v874
    %v995 = vpack.c.bf16 %v879, %v875
    %v996 = vpack.c.bf16 %v884, %v880
    %v997 = vpack.c.bf16 %v885, %v881
    %v998 = vpack.c.bf16 %v886, %v882
    %v999 = vpack.c.bf16 %v887, %v883
    %v1000 = vpack.c.bf16 %v892, %v888
    %v1001 = vpack.c.bf16 %v893, %v889
    %v1002 = vpack.c.bf16 %v894, %v890
    %v1003 = vpack.c.bf16 %v895, %v891
    %v1004 = vpack.c.bf16 %v900, %v896
    %v1005 = vpack.c.bf16 %v901, %v897
    %v1006 = vpack.c.bf16 %v902, %v898
    %v1007 = vpack.c.bf16 %v903, %v899
    %v1008 = vpack.c.bf16 %v908, %v904
    %v1009 = vpack.c.bf16 %v909, %v905
    %v1010 = vpack.c.bf16 %v910, %v906
    %v1011 = vpack.c.bf16 %v911, %v907
    %v1012 = vpack.c.bf16 %v916, %v912
    %v1013 = vpack.c.bf16 %v917, %v913
    %v1014 = vpack.c.bf16 %v918, %v914
    %v1015 = vpack.c.bf16 %v919, %v915
    %v1016 = vpack.c.bf16 %v924, %v920
    %v1017 = vpack.c.bf16 %v925, %v921
    %v1018 = vpack.c.bf16 %v926, %v922
    %v1019 = vpack.c.bf16 %v927, %v923
    %v1020 = vpack.c.bf16 %v932, %v928
    %v1021 = vpack.c.bf16 %v933, %v929
    %v1022 = vpack.c.bf16 %v934, %v930
    %v1023 = vpack.c.bf16 %v935, %v931
    %v1024 = vpack.c.bf16 %v940, %v936
    %v1025 = vpack.c.bf16 %v941, %v937
    %v1026 = vpack.c.bf16 %v942, %v938
    %v1027 = vpack.c.bf16 %v943, %v939
    %v1028 = vpack.c.bf16 %v948, %v944
    %v1029 = vpack.c.bf16 %v949, %v945
    %v1030 = vpack.c.bf16 %v950, %v946
    %v1031 = vpack.c.bf16 %v951, %v947
    %v1032 = vpack.c.bf16 %v956, %v952
    %v1033 = vpack.c.bf16 %v957, %v953
    %v1034 = vpack.c.bf16 %v958, %v954
    %v1035 = vpack.c.bf16 %v959, %v955
    %v1036 = vpack.c.bf16 %v964, %v960
    %v1037 = vpack.c.bf16 %v965, %v961
    %v1038 = vpack.c.bf16 %v966, %v962
    %v1039 = vpack.c.bf16 %v967, %v963
    %v1040 = vpack.c.bf16 %v972, %v968
    %v1041 = vpack.c.bf16 %v973, %v969
    %v1042 = vpack.c.bf16 %v974, %v970
    %v1043 = vpack.c.bf16 %v975, %v971
    %v1044 = vpack.c.bf16 %v980, %v976
    %v1045 = vpack.c.bf16 %v981, %v977
    %v1046 = vpack.c.bf16 %v982, %v978
    %v1047 = vpack.c.bf16 %v983, %v979
    %v1048 = vld [vmem:[#allocation7] sm:$0xf]
    %v1049 = vld [vmem:[#allocation7 + $0x4] sm:$0xf]
    %v1050 = vld [vmem:[#allocation7 + $0x8] sm:$0xf]
    %v1051 = vld [vmem:[#allocation7 + $0xc] sm:$0xf]
    %v1052 = vld [vmem:[#allocation7 + $0x10] sm:$0xf]
    %v1053 = vld [vmem:[#allocation7 + $0x14] sm:$0xf]
    %v1054 = vld [vmem:[#allocation7 + $0x18] sm:$0xf]
    %v1055 = vld [vmem:[#allocation7 + $0x1c] sm:$0xf]
    %v1056 = vld [vmem:[#allocation7 + $0x20] sm:$0xf]
    %v1057 = vld [vmem:[#allocation7 + $0x24] sm:$0xf]
    %v1058 = vld [vmem:[#allocation7 + $0x28] sm:$0xf]
    %v1059 = vld [vmem:[#allocation7 + $0x2c] sm:$0xf]
    %v1060 = vld [vmem:[#allocation7 + $0x30] sm:$0xf]
    %v1061 = vld [vmem:[#allocation7 + $0x34] sm:$0xf]
    %v1062 = vld [vmem:[#allocation7 + $0x38] sm:$0xf]
    %v1063 = vld [vmem:[#allocation7 + $0x3c] sm:$0xf]
    %v1064 = vld [vmem:[%s7] sm:$0x1]
    %v1066 = vlaneseq
    %v1067 = vshrl.u32 %v1066, 7
    %v1068 = vsub.s32 0, %v1067
    %v1069 = vrot.slane %v1064, %v1068
    %v1087 = vunpack.c.l.b16 %v1048
    %v1088 = vunpack.c.l.b16 %v1049
    %v1089 = vunpack.c.l.b16 %v1050
    %v1090 = vunpack.c.l.b16 %v1051
    %v1091 = vunpack.c.l.b16 %v1052
    %v1092 = vunpack.c.l.b16 %v1053
    %v1093 = vunpack.c.l.b16 %v1054
    %v1094 = vunpack.c.l.b16 %v1055
    %v1095 = vunpack.c.l.b16 %v1056
    %v1096 = vunpack.c.l.b16 %v1057
    %v1097 = vunpack.c.l.b16 %v1058
    %v1098 = vunpack.c.l.b16 %v1059
    %v1099 = vunpack.c.l.b16 %v1060
    %v1100 = vunpack.c.l.b16 %v1061
    %v1101 = vunpack.c.l.b16 %v1062
    %v1102 = vunpack.c.l.b16 %v1063
    %v1103 = vpack.c.b16 %v1088, %v1087
    %v1104 = vpack.c.b16 %v1090, %v1089
    %v1105 = vpack.c.b16 %v1092, %v1091
    %v1106 = vpack.c.b16 %v1094, %v1093
    %v1107 = vpack.c.b16 %v1096, %v1095
    %v1108 = vpack.c.b16 %v1098, %v1097
    %v1109 = vpack.c.b16 %v1100, %v1099
    %v1110 = vpack.c.b16 %v1102, %v1101
    %1119 = vmatprep.subr.bf16.mxu0 0
    %1120 = vmatpush1.bf16.msra.mxu0 %v1103
    %1121 = vmatprep.subr.bf16.mxu0 0
    %1122 = vmatpush1.bf16.msra.mxu0 %v1104
    %1123 = vmatprep.subr.bf16.mxu0 0
    %1124 = vmatpush1.bf16.msra.mxu0 %v1105
    %1125 = vmatprep.subr.bf16.mxu0 0
    %1126 = vmatpush1.bf16.msra.mxu0 %v1106
    %1127 = vmatprep.subr.bf16.mxu0 0
    %1128 = vmatpush1.bf16.msra.mxu0 %v1107
    %1129 = vmatprep.subr.bf16.mxu0 0
    %1130 = vmatpush1.bf16.msra.mxu0 %v1108
    %1131 = vmatprep.subr.bf16.mxu0 0
    %1132 = vmatpush1.bf16.msra.mxu0 %v1109
    %1133 = vmatprep.subr.bf16.mxu0 0
    %1134 = vmatpush1.bf16.msra.mxu0 %v1110
    %1135 = vmatprep.subr.bf16.mxu0 0
    %1136 = vmatpush1.bf16.msra.mxu0 0
    %1137 = vmatprep.subr.bf16.mxu0 0
    %1138 = vmatpush1.bf16.msra.mxu0 0
    %1139 = vmatprep.subr.bf16.mxu0 0
    %1140 = vmatpush1.bf16.msra.mxu0 0
    %1141 = vmatprep.subr.bf16.mxu0 0
    %1142 = vmatpush1.bf16.msra.mxu0 0
    %1143 = vmatprep.subr.bf16.mxu0 0
    %1144 = vmatpush1.bf16.msra.mxu0 0
    %1145 = vmatprep.subr.bf16.mxu0 0
    %1146 = vmatpush1.bf16.msra.mxu0 0
    %1147 = vmatprep.subr.bf16.mxu0 0
    %1148 = vmatpush1.bf16.msra.mxu0 0
    %1149 = vmatprep.subr.bf16.mxu0 0
    %1150 = vmatpush1.bf16.msra.mxu0 0
    %1151 = vmatprep.mubr.bf16.mxu0 0
    %1152 = vmatmul.mubr.bf16.gmra.mrb[0].mxu0 %v984
    %v1153 = vpop.f32.mrb[0].mxu0
    %v1154 = vadd.f32 %v1069, %v1153
    %v1155 = vpop.f32.mrb[0].mxu0
    %v1156 = vpop.f32.mrb[0].mxu0
    %v1157 = vadd.f32 %v1069, %v1156
    %v1158 = vpop.f32.mrb[0].mxu0
    %1159 = vmatprep.mubr.bf16.mxu0 0
    %1160 = vmatmul.mubr.bf16.gmra.mrb[0].mxu0 %v988
    %v1161 = vpop.f32.mrb[0].mxu0
    %v1162 = vadd.f32 %v1069, %v1161
    %v1163 = vpop.f32.mrb[0].mxu0
    %v1164 = vpop.f32.mrb[0].mxu0
    %v1165 = vadd.f32 %v1069, %v1164
    %v1166 = vpop.f32.mrb[0].mxu0
    %1167 = vmatprep.mubr.bf16.mxu0 0
    %1168 = vmatmul.mubr.bf16.gmra.mrb[0].mxu0 %v992
    %v1169 = vpop.f32.mrb[0].mxu0
    %v1170 = vadd.f32 %v1069, %v1169
    %v1171 = vpop.f32.mrb[0].mxu0
    %v1172 = vpop.f32.mrb[0].mxu0
    %v1173 = vadd.f32 %v1069, %v1172
    %v1174 = vpop.f32.mrb[0].mxu0
    %1175 = vmatprep.mubr.bf16.mxu0 0
    %1176 = vmatmul.mubr.bf16.gmra.mrb[0].mxu0 %v996
    %v1177 = vpop.f32.mrb[0].mxu0
    %v1178 = vadd.f32 %v1069, %v1177
    %v1179 = vpop.f32.mrb[0].mxu0
    %v1180 = vpop.f32.mrb[0].mxu0
    %v1181 = vadd.f32 %v1069, %v1180
    %v1182 = vpop.f32.mrb[0].mxu0
    %1183 = vmatprep.mubr.bf16.mxu0 0
    %1184 = vmatmul.mubr.bf16.gmra.mrb[0].mxu0 %v1000
    %v1185 = vpop.f32.mrb[0].mxu0
    %v1186 = vadd.f32 %v1069, %v1185
    %v1187 = vpop.f32.mrb[0].mxu0
    %v1188 = vpop.f32.mrb[0].mxu0
    %v1189 = vadd.f32 %v1069, %v1188
    %v1190 = vpop.f32.mrb[0].mxu0
    %1191 = vmatprep.mubr.bf16.mxu0 0
    %1192 = vmatmul.mubr.bf16.gmra.mrb[0].mxu0 %v1004
    %v1193 = vpop.f32.mrb[0].mxu0
    %v1194 = vadd.f32 %v1069, %v1193
    %v1195 = vpop.f32.mrb[0].mxu0
    %v1196 = vpop.f32.mrb[0].mxu0
    %v1197 = vadd.f32 %v1069, %v1196
    %v1198 = vpop.f32.mrb[0].mxu0
    %1199 = vmatprep.mubr.bf16.mxu0 0
    %1200 = vmatmul.mubr.bf16.gmra.mrb[0].mxu0 %v1008
    %v1201 = vpop.f32.mrb[0].mxu0
    %v1202 = vadd.f32 %v1069, %v1201
    %v1203 = vpop.f32.mrb[0].mxu0
    %v1204 = vpop.f32.mrb[0].mxu0
    %v1205 = vadd.f32 %v1069, %v1204
    %v1206 = vpop.f32.mrb[0].mxu0
    %1207 = vmatprep.mubr.bf16.mxu0 0
    %1208 = vmatmul.mubr.bf16.gmra.mrb[0].mxu0 %v1012
    %v1209 = vpop.f32.mrb[0].mxu0
    %v1210 = vadd.f32 %v1069, %v1209
    %v1211 = vpop.f32.mrb[0].mxu0
    %v1212 = vpop.f32.mrb[0].mxu0
    %v1213 = vadd.f32 %v1069, %v1212
    %v1214 = vpop.f32.mrb[0].mxu0
    %1215 = vmatprep.mubr.bf16.mxu0 0
    %1216 = vmatmul.mubr.bf16.gmra.mrb[0].mxu0 %v1016
    %v1217 = vpop.f32.mrb[0].mxu0
    %v1218 = vadd.f32 %v1069, %v1217
    %v1219 = vpop.f32.mrb[0].mxu0
    %v1220 = vpop.f32.mrb[0].mxu0
    %v1221 = vadd.f32 %v1069, %v1220
    %v1222 = vpop.f32.mrb[0].mxu0
    %1223 = vmatprep.mubr.bf16.mxu0 0
    %1224 = vmatmul.mubr.bf16.gmra.mrb[0].mxu0 %v1020
    %v1225 = vpop.f32.mrb[0].mxu0
    %v1226 = vadd.f32 %v1069, %v1225
    %v1227 = vpop.f32.mrb[0].mxu0
    %v1228 = vpop.f32.mrb[0].mxu0
    %v1229 = vadd.f32 %v1069, %v1228
    %v1230 = vpop.f32.mrb[0].mxu0
    %1231 = vmatprep.mubr.bf16.mxu0 0
    %1232 = vmatmul.mubr.bf16.gmra.mrb[0].mxu0 %v1024
    %v1233 = vpop.f32.mrb[0].mxu0
    %v1234 = vadd.f32 %v1069, %v1233
    %v1235 = vpop.f32.mrb[0].mxu0
    %v1236 = vpop.f32.mrb[0].mxu0
    %v1237 = vadd.f32 %v1069, %v1236
    %v1238 = vpop.f32.mrb[0].mxu0
    %1239 = vmatprep.mubr.bf16.mxu0 0
    %1240 = vmatmul.mubr.bf16.gmra.mrb[0].mxu0 %v1028
    %v1241 = vpop.f32.mrb[0].mxu0
    %v1242 = vadd.f32 %v1069, %v1241
    %v1243 = vpop.f32.mrb[0].mxu0
    %v1244 = vpop.f32.mrb[0].mxu0
    %v1245 = vadd.f32 %v1069, %v1244
    %v1246 = vpop.f32.mrb[0].mxu0
    %1247 = vmatprep.mubr.bf16.mxu0 0
    %1248 = vmatmul.mubr.bf16.gmra.mrb[0].mxu0 %v1032
    %v1249 = vpop.f32.mrb[0].mxu0
    %v1250 = vadd.f32 %v1069, %v1249
    %v1251 = vpop.f32.mrb[0].mxu0
    %v1252 = vpop.f32.mrb[0].mxu0
    %v1253 = vadd.f32 %v1069, %v1252
    %v1254 = vpop.f32.mrb[0].mxu0
    %1255 = vmatprep.mubr.bf16.mxu0 0
    %1256 = vmatmul.mubr.bf16.gmra.mrb[0].mxu0 %v1036
    %v1257 = vpop.f32.mrb[0].mxu0
    %v1258 = vadd.f32 %v1069, %v1257
    %v1259 = vpop.f32.mrb[0].mxu0
    %v1260 = vpop.f32.mrb[0].mxu0
    %v1261 = vadd.f32 %v1069, %v1260
    %v1262 = vpop.f32.mrb[0].mxu0
    %1263 = vmatprep.mubr.bf16.mxu0 0
    %1264 = vmatmul.mubr.bf16.gmra.mrb[0].mxu0 %v1040
    %v1265 = vpop.f32.mrb[0].mxu0
    %v1266 = vadd.f32 %v1069, %v1265
    %v1267 = vpop.f32.mrb[0].mxu0
    %v1268 = vpop.f32.mrb[0].mxu0
    %v1269 = vadd.f32 %v1069, %v1268
    %v1270 = vpop.f32.mrb[0].mxu0
    %1271 = vmatprep.mubr.bf16.mxu0 0
    %1272 = vmatmul.mubr.bf16.gmra.mrb[0].mxu0 %v1044
    %v1273 = vpop.f32.mrb[0].mxu0
    %v1274 = vadd.f32 %v1069, %v1273
    %v1275 = vpop.f32.mrb[0].mxu0
    %v1276 = vpop.f32.mrb[0].mxu0
    %v1277 = vadd.f32 %v1069, %v1276
    %v1278 = vpop.f32.mrb[0].mxu0
    %1279 = vdwg.mxu0
    %v1280 = vmax.f32 %v1154, 0.0
    %v1281 = vmax.f32 %v1157, 0.0
    %v1282 = vmax.f32 %v1162, 0.0
    %v1283 = vmax.f32 %v1165, 0.0
    %v1284 = vmax.f32 %v1170, 0.0
    %v1285 = vmax.f32 %v1173, 0.0
    %v1286 = vmax.f32 %v1178, 0.0
    %v1287 = vmax.f32 %v1181, 0.0
    %v1288 = vmax.f32 %v1186, 0.0
    %v1289 = vmax.f32 %v1189, 0.0
    %v1290 = vmax.f32 %v1194, 0.0
    %v1291 = vmax.f32 %v1197, 0.0
    %v1292 = vmax.f32 %v1202, 0.0
    %v1293 = vmax.f32 %v1205, 0.0
    %v1294 = vmax.f32 %v1210, 0.0
    %v1295 = vmax.f32 %v1213, 0.0
    %v1296 = vmax.f32 %v1218, 0.0
    %v1297 = vmax.f32 %v1221, 0.0
    %v1298 = vmax.f32 %v1226, 0.0
    %v1299 = vmax.f32 %v1229, 0.0
    %v1300 = vmax.f32 %v1234, 0.0
    %v1301 = vmax.f32 %v1237, 0.0
    %v1302 = vmax.f32 %v1242, 0.0
    %v1303 = vmax.f32 %v1245, 0.0
    %v1304 = vmax.f32 %v1250, 0.0
    %v1305 = vmax.f32 %v1253, 0.0
    %v1306 = vmax.f32 %v1258, 0.0
    %v1307 = vmax.f32 %v1261, 0.0
    %v1308 = vmax.f32 %v1266, 0.0
    %v1309 = vmax.f32 %v1269, 0.0
    %v1310 = vmax.f32 %v1274, 0.0
    %v1311 = vmax.f32 %v1277, 0.0
    %v1312 = vpack.c.bf16 %v1281, %v1280
    %v1313 = vpack.c.bf16 %v1283, %v1282
    %v1314 = vpack.c.bf16 %v1285, %v1284
    %v1315 = vpack.c.bf16 %v1287, %v1286
    %v1316 = vpack.c.bf16 %v1289, %v1288
    %v1317 = vpack.c.bf16 %v1291, %v1290
    %v1318 = vpack.c.bf16 %v1293, %v1292
    %v1319 = vpack.c.bf16 %v1295, %v1294
    %v1320 = vpack.c.bf16 %v1297, %v1296
    %v1321 = vpack.c.bf16 %v1299, %v1298
    %v1322 = vpack.c.bf16 %v1301, %v1300
    %v1323 = vpack.c.bf16 %v1303, %v1302
    %v1324 = vpack.c.bf16 %v1305, %v1304
    %v1325 = vpack.c.bf16 %v1307, %v1306
    %v1326 = vpack.c.bf16 %v1309, %v1308
    %v1327 = vpack.c.bf16 %v1311, %v1310
    %v1344 = vunpack.c.l.b16 %v1312
    %v1345 = vunpack.c.h.b16 %v1312
    %v1346 = vunpack.c.l.b16 %v1313
    %v1347 = vunpack.c.h.b16 %v1313
    %v1348 = vunpack.c.l.b16 %v1314
    %v1349 = vunpack.c.h.b16 %v1314
    %v1350 = vunpack.c.l.b16 %v1315
    %v1351 = vunpack.c.h.b16 %v1315
    %v1352 = vunpack.c.l.b16 %v1316
    %v1353 = vunpack.c.h.b16 %v1316
    %v1354 = vunpack.c.l.b16 %v1317
    %v1355 = vunpack.c.h.b16 %v1317
    %v1356 = vunpack.c.l.b16 %v1318
    %v1357 = vunpack.c.h.b16 %v1318
    %v1358 = vunpack.c.l.b16 %v1319
    %v1359 = vunpack.c.h.b16 %v1319
    %v1360 = vunpack.c.l.b16 %v1320
    %v1361 = vunpack.c.h.b16 %v1320
    %v1362 = vunpack.c.l.b16 %v1321
    %v1363 = vunpack.c.h.b16 %v1321
    %v1364 = vunpack.c.l.b16 %v1322
    %v1365 = vunpack.c.h.b16 %v1322
    %v1366 = vunpack.c.l.b16 %v1323
    %v1367 = vunpack.c.h.b16 %v1323
    %v1368 = vunpack.c.l.b16 %v1324
    %v1369 = vunpack.c.h.b16 %v1324
    %v1370 = vunpack.c.l.b16 %v1325
    %v1371 = vunpack.c.h.b16 %v1325
    %v1372 = vunpack.c.l.b16 %v1326
    %v1373 = vunpack.c.h.b16 %v1326
    %v1374 = vunpack.c.l.b16 %v1327
    %v1375 = vunpack.c.h.b16 %v1327
    %v1376 = vpack.c.b16 %v1344, %v1344
    %v1377 = vpack.c.b16 %v1345, %v1345
    %v1378 = vpack.c.b16 %v1346, %v1346
    %v1379 = vpack.c.b16 %v1347, %v1347
    %v1380 = vpack.c.b16 %v1348, %v1348
    %v1381 = vpack.c.b16 %v1349, %v1349
    %v1382 = vpack.c.b16 %v1350, %v1350
    %v1383 = vpack.c.b16 %v1351, %v1351
    %v1384 = vpack.c.b16 %v1352, %v1352
    %v1385 = vpack.c.b16 %v1353, %v1353
    %v1386 = vpack.c.b16 %v1354, %v1354
    %v1387 = vpack.c.b16 %v1355, %v1355
    %v1388 = vpack.c.b16 %v1356, %v1356
    %v1389 = vpack.c.b16 %v1357, %v1357
    %v1390 = vpack.c.b16 %v1358, %v1358
    %v1391 = vpack.c.b16 %v1359, %v1359
    %v1392 = vpack.c.b16 %v1360, %v1360
    %v1393 = vpack.c.b16 %v1361, %v1361
    %v1394 = vpack.c.b16 %v1362, %v1362
    %v1395 = vpack.c.b16 %v1363, %v1363
    %v1396 = vpack.c.b16 %v1364, %v1364
    %v1397 = vpack.c.b16 %v1365, %v1365
    %v1398 = vpack.c.b16 %v1366, %v1366
    %v1399 = vpack.c.b16 %v1367, %v1367
    %v1400 = vpack.c.b16 %v1368, %v1368
    %v1401 = vpack.c.b16 %v1369, %v1369
    %v1402 = vpack.c.b16 %v1370, %v1370
    %v1403 = vpack.c.b16 %v1371, %v1371
    %v1404 = vpack.c.b16 %v1372, %v1372
    %v1405 = vpack.c.b16 %v1373, %v1373
    %v1406 = vpack.c.b16 %v1374, %v1374
    %v1407 = vpack.c.b16 %v1375, %v1375
    %1440 = vst [vmem:[#allocation13] sm:$0xf] %v1376
    %1441 = vst [vmem:[#allocation13 + $0x4] sm:$0xf] %v1377
    %1442 = vst [vmem:[#allocation13 + $0x8] sm:$0xf] %v1378
    %1443 = vst [vmem:[#allocation13 + $0xc] sm:$0xf] %v1379
    %1444 = vst [vmem:[#allocation13 + $0x10] sm:$0xf] %v1380
    %1445 = vst [vmem:[#allocation13 + $0x14] sm:$0xf] %v1381
    %1446 = vst [vmem:[#allocation13 + $0x18] sm:$0xf] %v1382
    %1447 = vst [vmem:[#allocation13 + $0x1c] sm:$0xf] %v1383
    %1448 = vst [vmem:[#allocation13 + $0x20] sm:$0xf] %v1384
    %1449 = vst [vmem:[#allocation13 + $0x24] sm:$0xf] %v1385
    %1450 = vst [vmem:[#allocation13 + $0x28] sm:$0xf] %v1386
    %1451 = vst [vmem:[#allocation13 + $0x2c] sm:$0xf] %v1387
    %1452 = vst [vmem:[#allocation13 + $0x30] sm:$0xf] %v1388
    %1453 = vst [vmem:[#allocation13 + $0x34] sm:$0xf] %v1389
    %1454 = vst [vmem:[#allocation13 + $0x38] sm:$0xf] %v1390
    %1455 = vst [vmem:[#allocation13 + $0x3c] sm:$0xf] %v1391
    %1456 = vst [vmem:[#allocation13 + $0x40] sm:$0xf] %v1392
    %1457 = vst [vmem:[#allocation13 + $0x44] sm:$0xf] %v1393
    %1458 = vst [vmem:[#allocation13 + $0x48] sm:$0xf] %v1394
    %1459 = vst [vmem:[#allocation13 + $0x4c] sm:$0xf] %v1395
    %1460 = vst [vmem:[#allocation13 + $0x50] sm:$0xf] %v1396
    %1461 = vst [vmem:[#allocation13 + $0x54] sm:$0xf] %v1397
    %1462 = vst [vmem:[#allocation13 + $0x58] sm:$0xf] %v1398
    %1463 = vst [vmem:[#allocation13 + $0x5c] sm:$0xf] %v1399
    %1464 = vst [vmem:[#allocation13 + $0x60] sm:$0xf] %v1400
    %1465 = vst [vmem:[#allocation13 + $0x64] sm:$0xf] %v1401
    %1466 = vst [vmem:[#allocation13 + $0x68] sm:$0xf] %v1402
    %1467 = vst [vmem:[#allocation13 + $0x6c] sm:$0xf] %v1403
    %1468 = vst [vmem:[#allocation13 + $0x70] sm:$0xf] %v1404
    %1469 = vst [vmem:[#allocation13 + $0x74] sm:$0xf] %v1405
    %1470 = vst [vmem:[#allocation13 + $0x78] sm:$0xf] %v1406
    %1471 = vst [vmem:[#allocation13 + $0x7c] sm:$0xf] %v1407
    %v1472 = vld [vmem:[#allocation8] sm:$0xf]
    %v1473 = vld [vmem:[#allocation8 + $0x4] sm:$0xf]
    %v1474 = vld [vmem:[#allocation8 + $0x8] sm:$0xf]
    %v1475 = vld [vmem:[#allocation8 + $0xc] sm:$0xf]
    %v1476 = vld [vmem:[#allocation8 + $0x10] sm:$0xf]
    %v1477 = vld [vmem:[#allocation8 + $0x14] sm:$0xf]
    %v1478 = vld [vmem:[#allocation8 + $0x18] sm:$0xf]
    %v1479 = vld [vmem:[#allocation8 + $0x1c] sm:$0xf]
    %v1480 = vld [vmem:[#allocation8 + $0x20] sm:$0xf]
    %v1481 = vld [vmem:[#allocation8 + $0x24] sm:$0xf]
    %v1482 = vld [vmem:[#allocation8 + $0x28] sm:$0xf]
    %v1483 = vld [vmem:[#allocation8 + $0x2c] sm:$0xf]
    %v1484 = vld [vmem:[#allocation8 + $0x30] sm:$0xf]
    %v1485 = vld [vmem:[#allocation8 + $0x34] sm:$0xf]
    %v1486 = vld [vmem:[#allocation8 + $0x38] sm:$0xf]
    %v1487 = vld [vmem:[#allocation8 + $0x3c] sm:$0xf]
    %v1488 = vld [vmem:[%s8] sm:$0x1]
    %v1490 = vlaneseq
    %v1491 = vshrl.u32 %v1490, 7
    %v1492 = vsub.s32 0, %v1491
    %v1493 = vrot.slane %v1488, %v1492
    %v1511 = vunpack.c.l.b16 %v1472
    %v1512 = vunpack.c.l.b16 %v1473
    %v1513 = vunpack.c.l.b16 %v1474
    %v1514 = vunpack.c.l.b16 %v1475
    %v1515 = vunpack.c.l.b16 %v1476
    %v1516 = vunpack.c.l.b16 %v1477
    %v1517 = vunpack.c.l.b16 %v1478
    %v1518 = vunpack.c.l.b16 %v1479
    %v1519 = vunpack.c.l.b16 %v1480
    %v1520 = vunpack.c.l.b16 %v1481
    %v1521 = vunpack.c.l.b16 %v1482
    %v1522 = vunpack.c.l.b16 %v1483
    %v1523 = vunpack.c.l.b16 %v1484
    %v1524 = vunpack.c.l.b16 %v1485
    %v1525 = vunpack.c.l.b16 %v1486
    %v1526 = vunpack.c.l.b16 %v1487
    %v1527 = vpack.c.b16 %v1512, %v1511
    %v1528 = vpack.c.b16 %v1514, %v1513
    %v1529 = vpack.c.b16 %v1516, %v1515
    %v1530 = vpack.c.b16 %v1518, %v1517
    %v1531 = vpack.c.b16 %v1520, %v1519
    %v1532 = vpack.c.b16 %v1522, %v1521
    %v1533 = vpack.c.b16 %v1524, %v1523
    %v1534 = vpack.c.b16 %v1526, %v1525
    %1543 = vmatprep.subr.bf16.mxu0 0
    %1544 = vmatpush1.bf16.msra.mxu0 %v1527
    %1545 = vmatprep.subr.bf16.mxu0 0
    %1546 = vmatpush1.bf16.msra.mxu0 %v1528
    %1547 = vmatprep.subr.bf16.mxu0 0
    %1548 = vmatpush1.bf16.msra.mxu0 %v1529
    %1549 = vmatprep.subr.bf16.mxu0 0
    %1550 = vmatpush1.bf16.msra.mxu0 %v1530
    %1551 = vmatprep.subr.bf16.mxu0 0
    %1552 = vmatpush1.bf16.msra.mxu0 %v1531
    %1553 = vmatprep.subr.bf16.mxu0 0
    %1554 = vmatpush1.bf16.msra.mxu0 %v1532
    %1555 = vmatprep.subr.bf16.mxu0 0
    %1556 = vmatpush1.bf16.msra.mxu0 %v1533
    %1557 = vmatprep.subr.bf16.mxu0 0
    %1558 = vmatpush1.bf16.msra.mxu0 %v1534
    %1559 = vmatprep.subr.bf16.mxu0 0
    %1560 = vmatpush1.bf16.msra.mxu0 0
    %1561 = vmatprep.subr.bf16.mxu0 0
    %1562 = vmatpush1.bf16.msra.mxu0 0
    %1563 = vmatprep.subr.bf16.mxu0 0
    %1564 = vmatpush1.bf16.msra.mxu0 0
    %1565 = vmatprep.subr.bf16.mxu0 0
    %1566 = vmatpush1.bf16.msra.mxu0 0
    %1567 = vmatprep.subr.bf16.mxu0 0
    %1568 = vmatpush1.bf16.msra.mxu0 0
    %1569 = vmatprep.subr.bf16.mxu0 0
    %1570 = vmatpush1.bf16.msra.mxu0 0
    %1571 = vmatprep.subr.bf16.mxu0 0
    %1572 = vmatpush1.bf16.msra.mxu0 0
    %1573 = vmatprep.subr.bf16.mxu0 0
    %1574 = vmatpush1.bf16.msra.mxu0 0
    %1575 = vmatprep.mubr.bf16.mxu0 0
    %1576 = vmatmul.mubr.bf16.gmra.mrb[0].mxu0 %v985
    %v1577 = vpop.f32.mrb[0].mxu0
    %v1578 = vadd.f32 %v1493, %v1577
    %v1579 = vpop.f32.mrb[0].mxu0
    %v1580 = vpop.f32.mrb[0].mxu0
    %v1581 = vadd.f32 %v1493, %v1580
    %v1582 = vpop.f32.mrb[0].mxu0
    %1583 = vmatprep.mubr.bf16.mxu0 0
    %1584 = vmatmul.mubr.bf16.gmra.mrb[0].mxu0 %v989
    %v1585 = vpop.f32.mrb[0].mxu0
    %v1586 = vadd.f32 %v1493, %v1585
    %v1587 = vpop.f32.mrb[0].mxu0
    %v1588 = vpop.f32.mrb[0].mxu0
    %v1589 = vadd.f32 %v1493, %v1588
    %v1590 = vpop.f32.mrb[0].mxu0
    %1591 = vmatprep.mubr.bf16.mxu0 0
    %1592 = vmatmul.mubr.bf16.gmra.mrb[0].mxu0 %v993
    %v1593 = vpop.f32.mrb[0].mxu0
    %v1594 = vadd.f32 %v1493, %v1593
    %v1595 = vpop.f32.mrb[0].mxu0
    %v1596 = vpop.f32.mrb[0].mxu0
    %v1597 = vadd.f32 %v1493, %v1596
    %v1598 = vpop.f32.mrb[0].mxu0
    %1599 = vmatprep.mubr.bf16.mxu0 0
    %1600 = vmatmul.mubr.bf16.gmra.mrb[0].mxu0 %v997
    %v1601 = vpop.f32.mrb[0].mxu0
    %v1602 = vadd.f32 %v1493, %v1601
    %v1603 = vpop.f32.mrb[0].mxu0
    %v1604 = vpop.f32.mrb[0].mxu0
    %v1605 = vadd.f32 %v1493, %v1604
    %v1606 = vpop.f32.mrb[0].mxu0
    %1607 = vmatprep.mubr.bf16.mxu0 0
    %1608 = vmatmul.mubr.bf16.gmra.mrb[0].mxu0 %v1001
    %v1609 = vpop.f32.mrb[0].mxu0
    %v1610 = vadd.f32 %v1493, %v1609
    %v1611 = vpop.f32.mrb[0].mxu0
    %v1612 = vpop.f32.mrb[0].mxu0
    %v1613 = vadd.f32 %v1493, %v1612
    %v1614 = vpop.f32.mrb[0].mxu0
    %1615 = vmatprep.mubr.bf16.mxu0 0
    %1616 = vmatmul.mubr.bf16.gmra.mrb[0].mxu0 %v1005
    %v1617 = vpop.f32.mrb[0].mxu0
    %v1618 = vadd.f32 %v1493, %v1617
    %v1619 = vpop.f32.mrb[0].mxu0
    %v1620 = vpop.f32.mrb[0].mxu0
    %v1621 = vadd.f32 %v1493, %v1620
    %v1622 = vpop.f32.mrb[0].mxu0
    %1623 = vmatprep.mubr.bf16.mxu0 0
    %1624 = vmatmul.mubr.bf16.gmra.mrb[0].mxu0 %v1009
    %v1625 = vpop.f32.mrb[0].mxu0
    %v1626 = vadd.f32 %v1493, %v1625
    %v1627 = vpop.f32.mrb[0].mxu0
    %v1628 = vpop.f32.mrb[0].mxu0
    %v1629 = vadd.f32 %v1493, %v1628
    %v1630 = vpop.f32.mrb[0].mxu0
    %1631 = vmatprep.mubr.bf16.mxu0 0
    %1632 = vmatmul.mubr.bf16.gmra.mrb[0].mxu0 %v1013
    %v1633 = vpop.f32.mrb[0].mxu0
    %v1634 = vadd.f32 %v1493, %v1633
    %v1635 = vpop.f32.mrb[0].mxu0
    %v1636 = vpop.f32.mrb[0].mxu0
    %v1637 = vadd.f32 %v1493, %v1636
    %v1638 = vpop.f32.mrb[0].mxu0
    %1639 = vmatprep.mubr.bf16.mxu0 0
    %1640 = vmatmul.mubr.bf16.gmra.mrb[0].mxu0 %v1017
    %v1641 = vpop.f32.mrb[0].mxu0
    %v1642 = vadd.f32 %v1493, %v1641
    %v1643 = vpop.f32.mrb[0].mxu0
    %v1644 = vpop.f32.mrb[0].mxu0
    %v1645 = vadd.f32 %v1493, %v1644
    %v1646 = vpop.f32.mrb[0].mxu0
    %1647 = vmatprep.mubr.bf16.mxu0 0
    %1648 = vmatmul.mubr.bf16.gmra.mrb[0].mxu0 %v1021
    %v1649 = vpop.f32.mrb[0].mxu0
    %v1650 = vadd.f32 %v1493, %v1649
    %v1651 = vpop.f32.mrb[0].mxu0
    %v1652 = vpop.f32.mrb[0].mxu0
    %v1653 = vadd.f32 %v1493, %v1652
    %v1654 = vpop.f32.mrb[0].mxu0
    %1655 = vmatprep.mubr.bf16.mxu0 0
    %1656 = vmatmul.mubr.bf16.gmra.mrb[0].mxu0 %v1025
    %v1657 = vpop.f32.mrb[0].mxu0
    %v1658 = vadd.f32 %v1493, %v1657
    %v1659 = vpop.f32.mrb[0].mxu0
    %v1660 = vpop.f32.mrb[0].mxu0
    %v1661 = vadd.f32 %v1493, %v1660
    %v1662 = vpop.f32.mrb[0].mxu0
    %1663 = vmatprep.mubr.bf16.mxu0 0
    %1664 = vmatmul.mubr.bf16.gmra.mrb[0].mxu0 %v1029
    %v1665 = vpop.f32.mrb[0].mxu0
    %v1666 = vadd.f32 %v1493, %v1665
    %v1667 = vpop.f32.mrb[0].mxu0
    %v1668 = vpop.f32.mrb[0].mxu0
    %v1669 = vadd.f32 %v1493, %v1668
    %v1670 = vpop.f32.mrb[0].mxu0
    %1671 = vmatprep.mubr.bf16.mxu0 0
    %1672 = vmatmul.mubr.bf16.gmra.mrb[0].mxu0 %v1033
    %v1673 = vpop.f32.mrb[0].mxu0
    %v1674 = vadd.f32 %v1493, %v1673
    %v1675 = vpop.f32.mrb[0].mxu0
    %v1676 = vpop.f32.mrb[0].mxu0
    %v1677 = vadd.f32 %v1493, %v1676
    %v1678 = vpop.f32.mrb[0].mxu0
    %1679 = vmatprep.mubr.bf16.mxu0 0
    %1680 = vmatmul.mubr.bf16.gmra.mrb[0].mxu0 %v1037
    %v1681 = vpop.f32.mrb[0].mxu0
    %v1682 = vadd.f32 %v1493, %v1681
    %v1683 = vpop.f32.mrb[0].mxu0
    %v1684 = vpop.f32.mrb[0].mxu0
    %v1685 = vadd.f32 %v1493, %v1684
    %v1686 = vpop.f32.mrb[0].mxu0
    %1687 = vmatprep.mubr.bf16.mxu0 0
    %1688 = vmatmul.mubr.bf16.gmra.mrb[0].mxu0 %v1041
    %v1689 = vpop.f32.mrb[0].mxu0
    %v1690 = vadd.f32 %v1493, %v1689
    %v1691 = vpop.f32.mrb[0].mxu0
    %v1692 = vpop.f32.mrb[0].mxu0
    %v1693 = vadd.f32 %v1493, %v1692
    %v1694 = vpop.f32.mrb[0].mxu0
    %1695 = vmatprep.mubr.bf16.mxu0 0
    %1696 = vmatmul.mubr.bf16.gmra.mrb[0].mxu0 %v1045
    %v1697 = vpop.f32.mrb[0].mxu0
    %v1698 = vadd.f32 %v1493, %v1697
    %v1699 = vpop.f32.mrb[0].mxu0
    %v1700 = vpop.f32.mrb[0].mxu0
    %v1701 = vadd.f32 %v1493, %v1700
    %v1702 = vpop.f32.mrb[0].mxu0
    %1703 = vdwg.mxu0
    %v1704 = vmax.f32 %v1578, 0.0
    %v1705 = vmax.f32 %v1581, 0.0
    %v1706 = vmax.f32 %v1586, 0.0
    %v1707 = vmax.f32 %v1589, 0.0
    %v1708 = vmax.f32 %v1594, 0.0
    %v1709 = vmax.f32 %v1597, 0.0
    %v1710 = vmax.f32 %v1602, 0.0
    %v1711 = vmax.f32 %v1605, 0.0
    %v1712 = vmax.f32 %v1610, 0.0
    %v1713 = vmax.f32 %v1613, 0.0
    %v1714 = vmax.f32 %v1618, 0.0
    %v1715 = vmax.f32 %v1621, 0.0
    %v1716 = vmax.f32 %v1626, 0.0
    %v1717 = vmax.f32 %v1629, 0.0
    %v1718 = vmax.f32 %v1634, 0.0
    %v1719 = vmax.f32 %v1637, 0.0
    %v1720 = vmax.f32 %v1642, 0.0
    %v1721 = vmax.f32 %v1645, 0.0
    %v1722 = vmax.f32 %v1650, 0.0
    %v1723 = vmax.f32 %v1653, 0.0
    %v1724 = vmax.f32 %v1658, 0.0
    %v1725 = vmax.f32 %v1661, 0.0
    %v1726 = vmax.f32 %v1666, 0.0
    %v1727 = vmax.f32 %v1669, 0.0
    %v1728 = vmax.f32 %v1674, 0.0
    %v1729 = vmax.f32 %v1677, 0.0
    %v1730 = vmax.f32 %v1682, 0.0
    %v1731 = vmax.f32 %v1685, 0.0
    %v1732 = vmax.f32 %v1690, 0.0
    %v1733 = vmax.f32 %v1693, 0.0
    %v1734 = vmax.f32 %v1698, 0.0
    %v1735 = vmax.f32 %v1701, 0.0
    %v1736 = vpack.c.bf16 %v1705, %v1704
    %v1737 = vpack.c.bf16 %v1707, %v1706
    %v1738 = vpack.c.bf16 %v1709, %v1708
    %v1739 = vpack.c.bf16 %v1711, %v1710
    %v1740 = vpack.c.bf16 %v1713, %v1712
    %v1741 = vpack.c.bf16 %v1715, %v1714
    %v1742 = vpack.c.bf16 %v1717, %v1716
    %v1743 = vpack.c.bf16 %v1719, %v1718
    %v1744 = vpack.c.bf16 %v1721, %v1720
    %v1745 = vpack.c.bf16 %v1723, %v1722
    %v1746 = vpack.c.bf16 %v1725, %v1724
    %v1747 = vpack.c.bf16 %v1727, %v1726
    %v1748 = vpack.c.bf16 %v1729, %v1728
    %v1749 = vpack.c.bf16 %v1731, %v1730
    %v1750 = vpack.c.bf16 %v1733, %v1732
    %v1751 = vpack.c.bf16 %v1735, %v1734
    %v1768 = vunpack.c.l.b16 %v1736
    %v1769 = vunpack.c.h.b16 %v1736
    %v1770 = vunpack.c.l.b16 %v1737
    %v1771 = vunpack.c.h.b16 %v1737
    %v1772 = vunpack.c.l.b16 %v1738
    %v1773 = vunpack.c.h.b16 %v1738
    %v1774 = vunpack.c.l.b16 %v1739
    %v1775 = vunpack.c.h.b16 %v1739
    %v1776 = vunpack.c.l.b16 %v1740
    %v1777 = vunpack.c.h.b16 %v1740
    %v1778 = vunpack.c.l.b16 %v1741
    %v1779 = vunpack.c.h.b16 %v1741
    %v1780 = vunpack.c.l.b16 %v1742
    %v1781 = vunpack.c.h.b16 %v1742
    %v1782 = vunpack.c.l.b16 %v1743
    %v1783 = vunpack.c.h.b16 %v1743
    %v1784 = vunpack.c.l.b16 %v1744
    %v1785 = vunpack.c.h.b16 %v1744
    %v1786 = vunpack.c.l.b16 %v1745
    %v1787 = vunpack.c.h.b16 %v1745
    %v1788 = vunpack.c.l.b16 %v1746
    %v1789 = vunpack.c.h.b16 %v1746
    %v1790 = vunpack.c.l.b16 %v1747
    %v1791 = vunpack.c.h.b16 %v1747
    %v1792 = vunpack.c.l.b16 %v1748
    %v1793 = vunpack.c.h.b16 %v1748
    %v1794 = vunpack.c.l.b16 %v1749
    %v1795 = vunpack.c.h.b16 %v1749
    %v1796 = vunpack.c.l.b16 %v1750
    %v1797 = vunpack.c.h.b16 %v1750
    %v1798 = vunpack.c.l.b16 %v1751
    %v1799 = vunpack.c.h.b16 %v1751
    %v1800 = vpack.c.b16 %v1768, %v1768
    %v1801 = vpack.c.b16 %v1769, %v1769
    %v1802 = vpack.c.b16 %v1770, %v1770
    %v1803 = vpack.c.b16 %v1771, %v1771
    %v1804 = vpack.c.b16 %v1772, %v1772
    %v1805 = vpack.c.b16 %v1773, %v1773
    %v1806 = vpack.c.b16 %v1774, %v1774
    %v1807 = vpack.c.b16 %v1775, %v1775
    %v1808 = vpack.c.b16 %v1776, %v1776
    %v1809 = vpack.c.b16 %v1777, %v1777
    %v1810 = vpack.c.b16 %v1778, %v1778
    %v1811 = vpack.c.b16 %v1779, %v1779
    %v1812 = vpack.c.b16 %v1780, %v1780
    %v1813 = vpack.c.b16 %v1781, %v1781
    %v1814 = vpack.c.b16 %v1782, %v1782
    %v1815 = vpack.c.b16 %v1783, %v1783
    %v1816 = vpack.c.b16 %v1784, %v1784
    %v1817 = vpack.c.b16 %v1785, %v1785
    %v1818 = vpack.c.b16 %v1786, %v1786
    %v1819 = vpack.c.b16 %v1787, %v1787
    %v1820 = vpack.c.b16 %v1788, %v1788
    %v1821 = vpack.c.b16 %v1789, %v1789
    %v1822 = vpack.c.b16 %v1790, %v1790
    %v1823 = vpack.c.b16 %v1791, %v1791
    %v1824 = vpack.c.b16 %v1792, %v1792
    %v1825 = vpack.c.b16 %v1793, %v1793
    %v1826 = vpack.c.b16 %v1794, %v1794
    %v1827 = vpack.c.b16 %v1795, %v1795
    %v1828 = vpack.c.b16 %v1796, %v1796
    %v1829 = vpack.c.b16 %v1797, %v1797
    %v1830 = vpack.c.b16 %v1798, %v1798
    %v1831 = vpack.c.b16 %v1799, %v1799
    %1864 = vst [vmem:[#allocation14] sm:$0xf] %v1800
    %1865 = vst [vmem:[#allocation14 + $0x4] sm:$0xf] %v1801
    %1866 = vst [vmem:[#allocation14 + $0x8] sm:$0xf] %v1802
    %1867 = vst [vmem:[#allocation14 + $0xc] sm:$0xf] %v1803
    %1868 = vst [vmem:[#allocation14 + $0x10] sm:$0xf] %v1804
    %1869 = vst [vmem:[#allocation14 + $0x14] sm:$0xf] %v1805
    %1870 = vst [vmem:[#allocation14 + $0x18] sm:$0xf] %v1806
    %1871 = vst [vmem:[#allocation14 + $0x1c] sm:$0xf] %v1807
    %1872 = vst [vmem:[#allocation14 + $0x20] sm:$0xf] %v1808
    %1873 = vst [vmem:[#allocation14 + $0x24] sm:$0xf] %v1809
    %1874 = vst [vmem:[#allocation14 + $0x28] sm:$0xf] %v1810
    %1875 = vst [vmem:[#allocation14 + $0x2c] sm:$0xf] %v1811
    %1876 = vst [vmem:[#allocation14 + $0x30] sm:$0xf] %v1812
    %1877 = vst [vmem:[#allocation14 + $0x34] sm:$0xf] %v1813
    %1878 = vst [vmem:[#allocation14 + $0x38] sm:$0xf] %v1814
    %1879 = vst [vmem:[#allocation14 + $0x3c] sm:$0xf] %v1815
    %1880 = vst [vmem:[#allocation14 + $0x40] sm:$0xf] %v1816
    %1881 = vst [vmem:[#allocation14 + $0x44] sm:$0xf] %v1817
    %1882 = vst [vmem:[#allocation14 + $0x48] sm:$0xf] %v1818
    %1883 = vst [vmem:[#allocation14 + $0x4c] sm:$0xf] %v1819
    %1884 = vst [vmem:[#allocation14 + $0x50] sm:$0xf] %v1820
    %1885 = vst [vmem:[#allocation14 + $0x54] sm:$0xf] %v1821
    %1886 = vst [vmem:[#allocation14 + $0x58] sm:$0xf] %v1822
    %1887 = vst [vmem:[#allocation14 + $0x5c] sm:$0xf] %v1823
    %1888 = vst [vmem:[#allocation14 + $0x60] sm:$0xf] %v1824
    %1889 = vst [vmem:[#allocation14 + $0x64] sm:$0xf] %v1825
    %1890 = vst [vmem:[#allocation14 + $0x68] sm:$0xf] %v1826
    %1891 = vst [vmem:[#allocation14 + $0x6c] sm:$0xf] %v1827
    %1892 = vst [vmem:[#allocation14 + $0x70] sm:$0xf] %v1828
    %1893 = vst [vmem:[#allocation14 + $0x74] sm:$0xf] %v1829
    %1894 = vst [vmem:[#allocation14 + $0x78] sm:$0xf] %v1830
    %1895 = vst [vmem:[#allocation14 + $0x7c] sm:$0xf] %v1831
    %v1896 = vld [vmem:[#allocation10] sm:$0xf]
    %v1897 = vld [vmem:[#allocation10 + $0x4] sm:$0xf]
    %v1898 = vld [vmem:[#allocation10 + $0x8] sm:$0xf]
    %v1899 = vld [vmem:[#allocation10 + $0xc] sm:$0xf]
    %v1900 = vld [vmem:[#allocation10 + $0x10] sm:$0xf]
    %v1901 = vld [vmem:[#allocation10 + $0x14] sm:$0xf]
    %v1902 = vld [vmem:[#allocation10 + $0x18] sm:$0xf]
    %v1903 = vld [vmem:[#allocation10 + $0x1c] sm:$0xf]
    %v1904 = vld [vmem:[#allocation10 + $0x20] sm:$0xf]
    %v1905 = vld [vmem:[#allocation10 + $0x24] sm:$0xf]
    %v1906 = vld [vmem:[#allocation10 + $0x28] sm:$0xf]
    %v1907 = vld [vmem:[#allocation10 + $0x2c] sm:$0xf]
    %v1908 = vld [vmem:[#allocation10 + $0x30] sm:$0xf]
    %v1909 = vld [vmem:[#allocation10 + $0x34] sm:$0xf]
    %v1910 = vld [vmem:[#allocation10 + $0x38] sm:$0xf]
    %v1911 = vld [vmem:[#allocation10 + $0x3c] sm:$0xf]
    %v1912 = vld [vmem:[%s9] sm:$0x1]
    %v1914 = vlaneseq
    %v1915 = vshrl.u32 %v1914, 7
    %v1916 = vsub.s32 0, %v1915
    %v1917 = vrot.slane %v1912, %v1916
    %v1935 = vunpack.c.l.b16 %v1896
    %v1936 = vunpack.c.l.b16 %v1897
    %v1937 = vunpack.c.l.b16 %v1898
    %v1938 = vunpack.c.l.b16 %v1899
    %v1939 = vunpack.c.l.b16 %v1900
    %v1940 = vunpack.c.l.b16 %v1901
    %v1941 = vunpack.c.l.b16 %v1902
    %v1942 = vunpack.c.l.b16 %v1903
    %v1943 = vunpack.c.l.b16 %v1904
    %v1944 = vunpack.c.l.b16 %v1905
    %v1945 = vunpack.c.l.b16 %v1906
    %v1946 = vunpack.c.l.b16 %v1907
    %v1947 = vunpack.c.l.b16 %v1908
    %v1948 = vunpack.c.l.b16 %v1909
    %v1949 = vunpack.c.l.b16 %v1910
    %v1950 = vunpack.c.l.b16 %v1911
    %v1951 = vpack.c.b16 %v1936, %v1935
    %v1952 = vpack.c.b16 %v1938, %v1937
    %v1953 = vpack.c.b16 %v1940, %v1939
    %v1954 = vpack.c.b16 %v1942, %v1941
    %v1955 = vpack.c.b16 %v1944, %v1943
    %v1956 = vpack.c.b16 %v1946, %v1945
    %v1957 = vpack.c.b16 %v1948, %v1947
    %v1958 = vpack.c.b16 %v1950, %v1949
    %1967 = vmatprep.subr.bf16.mxu0 0
    %1968 = vmatpush1.bf16.msra.mxu0 %v1951
    %1969 = vmatprep.subr.bf16.mxu0 0
    %1970 = vmatpush1.bf16.msra.mxu0 %v1952
    %1971 = vmatprep.subr.bf16.mxu0 0
    %1972 = vmatpush1.bf16.msra.mxu0 %v1953
    %1973 = vmatprep.subr.bf16.mxu0 0
    %1974 = vmatpush1.bf16.msra.mxu0 %v1954
    %1975 = vmatprep.subr.bf16.mxu0 0
    %1976 = vmatpush1.bf16.msra.mxu0 %v1955
    %1977 = vmatprep.subr.bf16.mxu0 0
    %1978 = vmatpush1.bf16.msra.mxu0 %v1956
    %1979 = vmatprep.subr.bf16.mxu0 0
    %1980 = vmatpush1.bf16.msra.mxu0 %v1957
    %1981 = vmatprep.subr.bf16.mxu0 0
    %1982 = vmatpush1.bf16.msra.mxu0 %v1958
    %1983 = vmatprep.subr.bf16.mxu0 0
    %1984 = vmatpush1.bf16.msra.mxu0 0
    %1985 = vmatprep.subr.bf16.mxu0 0
    %1986 = vmatpush1.bf16.msra.mxu0 0
    %1987 = vmatprep.subr.bf16.mxu0 0
    %1988 = vmatpush1.bf16.msra.mxu0 0
    %1989 = vmatprep.subr.bf16.mxu0 0
    %1990 = vmatpush1.bf16.msra.mxu0 0
    %1991 = vmatprep.subr.bf16.mxu0 0
    %1992 = vmatpush1.bf16.msra.mxu0 0
    %1993 = vmatprep.subr.bf16.mxu0 0
    %1994 = vmatpush1.bf16.msra.mxu0 0
    %1995 = vmatprep.subr.bf16.mxu0 0
    %1996 = vmatpush1.bf16.msra.mxu0 0
    %1997 = vmatprep.subr.bf16.mxu0 0
    %1998 = vmatpush1.bf16.msra.mxu0 0
    %1999 = vmatprep.mubr.bf16.mxu0 0
    %2000 = vmatmul.mubr.bf16.gmra.mrb[0].mxu0 %v986
    %v2001 = vpop.f32.mrb[0].mxu0
    %v2002 = vadd.f32 %v1917, %v2001
    %v2003 = vpop.f32.mrb[0].mxu0
    %v2004 = vpop.f32.mrb[0].mxu0
    %v2005 = vadd.f32 %v1917, %v2004
    %v2006 = vpop.f32.mrb[0].mxu0
    %2007 = vmatprep.mubr.bf16.mxu0 0
    %2008 = vmatmul.mubr.bf16.gmra.mrb[0].mxu0 %v990
    %v2009 = vpop.f32.mrb[0].mxu0
    %v2010 = vadd.f32 %v1917, %v2009
    %v2011 = vpop.f32.mrb[0].mxu0
    %v2012 = vpop.f32.mrb[0].mxu0
    %v2013 = vadd.f32 %v1917, %v2012
    %v2014 = vpop.f32.mrb[0].mxu0
    %2015 = vmatprep.mubr.bf16.mxu0 0
    %2016 = vmatmul.mubr.bf16.gmra.mrb[0].mxu0 %v994
    %v2017 = vpop.f32.mrb[0].mxu0
    %v2018 = vadd.f32 %v1917, %v2017
    %v2019 = vpop.f32.mrb[0].mxu0
    %v2020 = vpop.f32.mrb[0].mxu0
    %v2021 = vadd.f32 %v1917, %v2020
    %v2022 = vpop.f32.mrb[0].mxu0
    %2023 = vmatprep.mubr.bf16.mxu0 0
    %2024 = vmatmul.mubr.bf16.gmra.mrb[0].mxu0 %v998
    %v2025 = vpop.f32.mrb[0].mxu0
    %v2026 = vadd.f32 %v1917, %v2025
    %v2027 = vpop.f32.mrb[0].mxu0
    %v2028 = vpop.f32.mrb[0].mxu0
    %v2029 = vadd.f32 %v1917, %v2028
    %v2030 = vpop.f32.mrb[0].mxu0
    %2031 = vmatprep.mubr.bf16.mxu0 0
    %2032 = vmatmul.mubr.bf16.gmra.mrb[0].mxu0 %v1002
    %v2033 = vpop.f32.mrb[0].mxu0
    %v2034 = vadd.f32 %v1917, %v2033
    %v2035 = vpop.f32.mrb[0].mxu0
    %v2036 = vpop.f32.mrb[0].mxu0
    %v2037 = vadd.f32 %v1917, %v2036
    %v2038 = vpop.f32.mrb[0].mxu0
    %2039 = vmatprep.mubr.bf16.mxu0 0
    %2040 = vmatmul.mubr.bf16.gmra.mrb[0].mxu0 %v1006
    %v2041 = vpop.f32.mrb[0].mxu0
    %v2042 = vadd.f32 %v1917, %v2041
    %v2043 = vpop.f32.mrb[0].mxu0
    %v2044 = vpop.f32.mrb[0].mxu0
    %v2045 = vadd.f32 %v1917, %v2044
    %v2046 = vpop.f32.mrb[0].mxu0
    %2047 = vmatprep.mubr.bf16.mxu0 0
    %2048 = vmatmul.mubr.bf16.gmra.mrb[0].mxu0 %v1010
    %v2049 = vpop.f32.mrb[0].mxu0
    %v2050 = vadd.f32 %v1917, %v2049
    %v2051 = vpop.f32.mrb[0].mxu0
    %v2052 = vpop.f32.mrb[0].mxu0
    %v2053 = vadd.f32 %v1917, %v2052
    %v2054 = vpop.f32.mrb[0].mxu0
    %2055 = vmatprep.mubr.bf16.mxu0 0
    %2056 = vmatmul.mubr.bf16.gmra.mrb[0].mxu0 %v1014
    %v2057 = vpop.f32.mrb[0].mxu0
    %v2058 = vadd.f32 %v1917, %v2057
    %v2059 = vpop.f32.mrb[0].mxu0
    %v2060 = vpop.f32.mrb[0].mxu0
    %v2061 = vadd.f32 %v1917, %v2060
    %v2062 = vpop.f32.mrb[0].mxu0
    %2063 = vmatprep.mubr.bf16.mxu0 0
    %2064 = vmatmul.mubr.bf16.gmra.mrb[0].mxu0 %v1018
    %v2065 = vpop.f32.mrb[0].mxu0
    %v2066 = vadd.f32 %v1917, %v2065
    %v2067 = vpop.f32.mrb[0].mxu0
    %v2068 = vpop.f32.mrb[0].mxu0
    %v2069 = vadd.f32 %v1917, %v2068
    %v2070 = vpop.f32.mrb[0].mxu0
    %2071 = vmatprep.mubr.bf16.mxu0 0
    %2072 = vmatmul.mubr.bf16.gmra.mrb[0].mxu0 %v1022
    %v2073 = vpop.f32.mrb[0].mxu0
    %v2074 = vadd.f32 %v1917, %v2073
    %v2075 = vpop.f32.mrb[0].mxu0
    %v2076 = vpop.f32.mrb[0].mxu0
    %v2077 = vadd.f32 %v1917, %v2076
    %v2078 = vpop.f32.mrb[0].mxu0
    %2079 = vmatprep.mubr.bf16.mxu0 0
    %2080 = vmatmul.mubr.bf16.gmra.mrb[0].mxu0 %v1026
    %v2081 = vpop.f32.mrb[0].mxu0
    %v2082 = vadd.f32 %v1917, %v2081
    %v2083 = vpop.f32.mrb[0].mxu0
    %v2084 = vpop.f32.mrb[0].mxu0
    %v2085 = vadd.f32 %v1917, %v2084
    %v2086 = vpop.f32.mrb[0].mxu0
    %2087 = vmatprep.mubr.bf16.mxu0 0
    %2088 = vmatmul.mubr.bf16.gmra.mrb[0].mxu0 %v1030
    %v2089 = vpop.f32.mrb[0].mxu0
    %v2090 = vadd.f32 %v1917, %v2089
    %v2091 = vpop.f32.mrb[0].mxu0
    %v2092 = vpop.f32.mrb[0].mxu0
    %v2093 = vadd.f32 %v1917, %v2092
    %v2094 = vpop.f32.mrb[0].mxu0
    %2095 = vmatprep.mubr.bf16.mxu0 0
    %2096 = vmatmul.mubr.bf16.gmra.mrb[0].mxu0 %v1034
    %v2097 = vpop.f32.mrb[0].mxu0
    %v2098 = vadd.f32 %v1917, %v2097
    %v2099 = vpop.f32.mrb[0].mxu0
    %v2100 = vpop.f32.mrb[0].mxu0
    %v2101 = vadd.f32 %v1917, %v2100
    %v2102 = vpop.f32.mrb[0].mxu0
    %2103 = vmatprep.mubr.bf16.mxu0 0
    %2104 = vmatmul.mubr.bf16.gmra.mrb[0].mxu0 %v1038
    %v2105 = vpop.f32.mrb[0].mxu0
    %v2106 = vadd.f32 %v1917, %v2105
    %v2107 = vpop.f32.mrb[0].mxu0
    %v2108 = vpop.f32.mrb[0].mxu0
    %v2109 = vadd.f32 %v1917, %v2108
    %v2110 = vpop.f32.mrb[0].mxu0
    %2111 = vmatprep.mubr.bf16.mxu0 0
    %2112 = vmatmul.mubr.bf16.gmra.mrb[0].mxu0 %v1042
    %v2113 = vpop.f32.mrb[0].mxu0
    %v2114 = vadd.f32 %v1917, %v2113
    %v2115 = vpop.f32.mrb[0].mxu0
    %v2116 = vpop.f32.mrb[0].mxu0
    %v2117 = vadd.f32 %v1917, %v2116
    %v2118 = vpop.f32.mrb[0].mxu0
    %2119 = vmatprep.mubr.bf16.mxu0 0
    %2120 = vmatmul.mubr.bf16.gmra.mrb[0].mxu0 %v1046
    %v2121 = vpop.f32.mrb[0].mxu0
    %v2122 = vadd.f32 %v1917, %v2121
    %v2123 = vpop.f32.mrb[0].mxu0
    %v2124 = vpop.f32.mrb[0].mxu0
    %v2125 = vadd.f32 %v1917, %v2124
    %v2126 = vpop.f32.mrb[0].mxu0
    %2127 = vdwg.mxu0
    %v2128 = vmax.f32 %v2002, 0.0
    %v2129 = vmax.f32 %v2005, 0.0
    %v2130 = vmax.f32 %v2010, 0.0
    %v2131 = vmax.f32 %v2013, 0.0
    %v2132 = vmax.f32 %v2018, 0.0
    %v2133 = vmax.f32 %v2021, 0.0
    %v2134 = vmax.f32 %v2026, 0.0
    %v2135 = vmax.f32 %v2029, 0.0
    %v2136 = vmax.f32 %v2034, 0.0
    %v2137 = vmax.f32 %v2037, 0.0
    %v2138 = vmax.f32 %v2042, 0.0
    %v2139 = vmax.f32 %v2045, 0.0
    %v2140 = vmax.f32 %v2050, 0.0
    %v2141 = vmax.f32 %v2053, 0.0
    %v2142 = vmax.f32 %v2058, 0.0
    %v2143 = vmax.f32 %v2061, 0.0
    %v2144 = vmax.f32 %v2066, 0.0
    %v2145 = vmax.f32 %v2069, 0.0
    %v2146 = vmax.f32 %v2074, 0.0
    %v2147 = vmax.f32 %v2077, 0.0
    %v2148 = vmax.f32 %v2082, 0.0
    %v2149 = vmax.f32 %v2085, 0.0
    %v2150 = vmax.f32 %v2090, 0.0
    %v2151 = vmax.f32 %v2093, 0.0
    %v2152 = vmax.f32 %v2098, 0.0
    %v2153 = vmax.f32 %v2101, 0.0
    %v2154 = vmax.f32 %v2106, 0.0
    %v2155 = vmax.f32 %v2109, 0.0
    %v2156 = vmax.f32 %v2114, 0.0
    %v2157 = vmax.f32 %v2117, 0.0
    %v2158 = vmax.f32 %v2122, 0.0
    %v2159 = vmax.f32 %v2125, 0.0
    %v2160 = vpack.c.bf16 %v2129, %v2128
    %v2161 = vpack.c.bf16 %v2131, %v2130
    %v2162 = vpack.c.bf16 %v2133, %v2132
    %v2163 = vpack.c.bf16 %v2135, %v2134
    %v2164 = vpack.c.bf16 %v2137, %v2136
    %v2165 = vpack.c.bf16 %v2139, %v2138
    %v2166 = vpack.c.bf16 %v2141, %v2140
    %v2167 = vpack.c.bf16 %v2143, %v2142
    %v2168 = vpack.c.bf16 %v2145, %v2144
    %v2169 = vpack.c.bf16 %v2147, %v2146
    %v2170 = vpack.c.bf16 %v2149, %v2148
    %v2171 = vpack.c.bf16 %v2151, %v2150
    %v2172 = vpack.c.bf16 %v2153, %v2152
    %v2173 = vpack.c.bf16 %v2155, %v2154
    %v2174 = vpack.c.bf16 %v2157, %v2156
    %v2175 = vpack.c.bf16 %v2159, %v2158
    %v2192 = vunpack.c.l.b16 %v2160
    %v2193 = vunpack.c.h.b16 %v2160
    %v2194 = vunpack.c.l.b16 %v2161
    %v2195 = vunpack.c.h.b16 %v2161
    %v2196 = vunpack.c.l.b16 %v2162
    %v2197 = vunpack.c.h.b16 %v2162
    %v2198 = vunpack.c.l.b16 %v2163
    %v2199 = vunpack.c.h.b16 %v2163
    %v2200 = vunpack.c.l.b16 %v2164
    %v2201 = vunpack.c.h.b16 %v2164
    %v2202 = vunpack.c.l.b16 %v2165
    %v2203 = vunpack.c.h.b16 %v2165
    %v2204 = vunpack.c.l.b16 %v2166
    %v2205 = vunpack.c.h.b16 %v2166
    %v2206 = vunpack.c.l.b16 %v2167
    %v2207 = vunpack.c.h.b16 %v2167
    %v2208 = vunpack.c.l.b16 %v2168
    %v2209 = vunpack.c.h.b16 %v2168
    %v2210 = vunpack.c.l.b16 %v2169
    %v2211 = vunpack.c.h.b16 %v2169
    %v2212 = vunpack.c.l.b16 %v2170
    %v2213 = vunpack.c.h.b16 %v2170
    %v2214 = vunpack.c.l.b16 %v2171
    %v2215 = vunpack.c.h.b16 %v2171
    %v2216 = vunpack.c.l.b16 %v2172
    %v2217 = vunpack.c.h.b16 %v2172
    %v2218 = vunpack.c.l.b16 %v2173
    %v2219 = vunpack.c.h.b16 %v2173
    %v2220 = vunpack.c.l.b16 %v2174
    %v2221 = vunpack.c.h.b16 %v2174
    %v2222 = vunpack.c.l.b16 %v2175
    %v2223 = vunpack.c.h.b16 %v2175
    %v2224 = vpack.c.b16 %v2192, %v2192
    %v2225 = vpack.c.b16 %v2193, %v2193
    %v2226 = vpack.c.b16 %v2194, %v2194
    %v2227 = vpack.c.b16 %v2195, %v2195
    %v2228 = vpack.c.b16 %v2196, %v2196
    %v2229 = vpack.c.b16 %v2197, %v2197
    %v2230 = vpack.c.b16 %v2198, %v2198
    %v2231 = vpack.c.b16 %v2199, %v2199
    %v2232 = vpack.c.b16 %v2200, %v2200
    %v2233 = vpack.c.b16 %v2201, %v2201
    %v2234 = vpack.c.b16 %v2202, %v2202
    %v2235 = vpack.c.b16 %v2203, %v2203
    %v2236 = vpack.c.b16 %v2204, %v2204
    %v2237 = vpack.c.b16 %v2205, %v2205
    %v2238 = vpack.c.b16 %v2206, %v2206
    %v2239 = vpack.c.b16 %v2207, %v2207
    %v2240 = vpack.c.b16 %v2208, %v2208
    %v2241 = vpack.c.b16 %v2209, %v2209
    %v2242 = vpack.c.b16 %v2210, %v2210
    %v2243 = vpack.c.b16 %v2211, %v2211
    %v2244 = vpack.c.b16 %v2212, %v2212
    %v2245 = vpack.c.b16 %v2213, %v2213
    %v2246 = vpack.c.b16 %v2214, %v2214
    %v2247 = vpack.c.b16 %v2215, %v2215
    %v2248 = vpack.c.b16 %v2216, %v2216
    %v2249 = vpack.c.b16 %v2217, %v2217
    %v2250 = vpack.c.b16 %v2218, %v2218
    %v2251 = vpack.c.b16 %v2219, %v2219
    %v2252 = vpack.c.b16 %v2220, %v2220
    %v2253 = vpack.c.b16 %v2221, %v2221
    %v2254 = vpack.c.b16 %v2222, %v2222
    %v2255 = vpack.c.b16 %v2223, %v2223
    %2288 = vst [vmem:[#allocation16] sm:$0xf] %v2224
    %2289 = vst [vmem:[#allocation16 + $0x4] sm:$0xf] %v2225
    %2290 = vst [vmem:[#allocation16 + $0x8] sm:$0xf] %v2226
    %2291 = vst [vmem:[#allocation16 + $0xc] sm:$0xf] %v2227
    %2292 = vst [vmem:[#allocation16 + $0x10] sm:$0xf] %v2228
    %2293 = vst [vmem:[#allocation16 + $0x14] sm:$0xf] %v2229
    %2294 = vst [vmem:[#allocation16 + $0x18] sm:$0xf] %v2230
    %2295 = vst [vmem:[#allocation16 + $0x1c] sm:$0xf] %v2231
    %2296 = vst [vmem:[#allocation16 + $0x20] sm:$0xf] %v2232
    %2297 = vst [vmem:[#allocation16 + $0x24] sm:$0xf] %v2233
    %2298 = vst [vmem:[#allocation16 + $0x28] sm:$0xf] %v2234
    %2299 = vst [vmem:[#allocation16 + $0x2c] sm:$0xf] %v2235
    %2300 = vst [vmem:[#allocation16 + $0x30] sm:$0xf] %v2236
    %2301 = vst [vmem:[#allocation16 + $0x34] sm:$0xf] %v2237
    %2302 = vst [vmem:[#allocation16 + $0x38] sm:$0xf] %v2238
    %2303 = vst [vmem:[#allocation16 + $0x3c] sm:$0xf] %v2239
    %2304 = vst [vmem:[#allocation16 + $0x40] sm:$0xf] %v2240
    %2305 = vst [vmem:[#allocation16 + $0x44] sm:$0xf] %v2241
    %2306 = vst [vmem:[#allocation16 + $0x48] sm:$0xf] %v2242
    %2307 = vst [vmem:[#allocation16 + $0x4c] sm:$0xf] %v2243
    %2308 = vst [vmem:[#allocation16 + $0x50] sm:$0xf] %v2244
    %2309 = vst [vmem:[#allocation16 + $0x54] sm:$0xf] %v2245
    %2310 = vst [vmem:[#allocation16 + $0x58] sm:$0xf] %v2246
    %2311 = vst [vmem:[#allocation16 + $0x5c] sm:$0xf] %v2247
    %2312 = vst [vmem:[#allocation16 + $0x60] sm:$0xf] %v2248
    %2313 = vst [vmem:[#allocation16 + $0x64] sm:$0xf] %v2249
    %2314 = vst [vmem:[#allocation16 + $0x68] sm:$0xf] %v2250
    %2315 = vst [vmem:[#allocation16 + $0x6c] sm:$0xf] %v2251
    %2316 = vst [vmem:[#allocation16 + $0x70] sm:$0xf] %v2252
    %2317 = vst [vmem:[#allocation16 + $0x74] sm:$0xf] %v2253
    %2318 = vst [vmem:[#allocation16 + $0x78] sm:$0xf] %v2254
    %2319 = vst [vmem:[#allocation16 + $0x7c] sm:$0xf] %v2255
    %v2320 = vld [vmem:[#allocation11] sm:$0xf]
    %v2321 = vld [vmem:[#allocation11 + $0x4] sm:$0xf]
    %v2322 = vld [vmem:[#allocation11 + $0x8] sm:$0xf]
    %v2323 = vld [vmem:[#allocation11 + $0xc] sm:$0xf]
    %v2324 = vld [vmem:[#allocation11 + $0x10] sm:$0xf]
    %v2325 = vld [vmem:[#allocation11 + $0x14] sm:$0xf]
    %v2326 = vld [vmem:[#allocation11 + $0x18] sm:$0xf]
    %v2327 = vld [vmem:[#allocation11 + $0x1c] sm:$0xf]
    %v2328 = vld [vmem:[#allocation11 + $0x20] sm:$0xf]
    %v2329 = vld [vmem:[#allocation11 + $0x24] sm:$0xf]
    %v2330 = vld [vmem:[#allocation11 + $0x28] sm:$0xf]
    %v2331 = vld [vmem:[#allocation11 + $0x2c] sm:$0xf]
    %v2332 = vld [vmem:[#allocation11 + $0x30] sm:$0xf]
    %v2333 = vld [vmem:[#allocation11 + $0x34] sm:$0xf]
    %v2334 = vld [vmem:[#allocation11 + $0x38] sm:$0xf]
    %v2335 = vld [vmem:[#allocation11 + $0x3c] sm:$0xf]
    %v2336 = vld [vmem:[%s10] sm:$0x1]
    %v2338 = vlaneseq
    %v2339 = vshrl.u32 %v2338, 7
    %v2340 = vsub.s32 0, %v2339
    %v2341 = vrot.slane %v2336, %v2340
    %v2359 = vunpack.c.l.b16 %v2320
    %v2360 = vunpack.c.l.b16 %v2321
    %v2361 = vunpack.c.l.b16 %v2322
    %v2362 = vunpack.c.l.b16 %v2323
    %v2363 = vunpack.c.l.b16 %v2324
    %v2364 = vunpack.c.l.b16 %v2325
    %v2365 = vunpack.c.l.b16 %v2326
    %v2366 = vunpack.c.l.b16 %v2327
    %v2367 = vunpack.c.l.b16 %v2328
    %v2368 = vunpack.c.l.b16 %v2329
    %v2369 = vunpack.c.l.b16 %v2330
    %v2370 = vunpack.c.l.b16 %v2331
    %v2371 = vunpack.c.l.b16 %v2332
    %v2372 = vunpack.c.l.b16 %v2333
    %v2373 = vunpack.c.l.b16 %v2334
    %v2374 = vunpack.c.l.b16 %v2335
    %v2375 = vpack.c.b16 %v2360, %v2359
    %v2376 = vpack.c.b16 %v2362, %v2361
    %v2377 = vpack.c.b16 %v2364, %v2363
    %v2378 = vpack.c.b16 %v2366, %v2365
    %v2379 = vpack.c.b16 %v2368, %v2367
    %v2380 = vpack.c.b16 %v2370, %v2369
    %v2381 = vpack.c.b16 %v2372, %v2371
    %v2382 = vpack.c.b16 %v2374, %v2373
    %2391 = vmatprep.subr.bf16.mxu0 0
    %2392 = vmatpush1.bf16.msra.mxu0 %v2375
    %2393 = vmatprep.subr.bf16.mxu0 0
    %2394 = vmatpush1.bf16.msra.mxu0 %v2376
    %2395 = vmatprep.subr.bf16.mxu0 0
    %2396 = vmatpush1.bf16.msra.mxu0 %v2377
    %2397 = vmatprep.subr.bf16.mxu0 0
    %2398 = vmatpush1.bf16.msra.mxu0 %v2378
    %2399 = vmatprep.subr.bf16.mxu0 0
    %2400 = vmatpush1.bf16.msra.mxu0 %v2379
    %2401 = vmatprep.subr.bf16.mxu0 0
    %2402 = vmatpush1.bf16.msra.mxu0 %v2380
    %2403 = vmatprep.subr.bf16.mxu0 0
    %2404 = vmatpush1.bf16.msra.mxu0 %v2381
    %2405 = vmatprep.subr.bf16.mxu0 0
    %2406 = vmatpush1.bf16.msra.mxu0 %v2382
    %2407 = vmatprep.subr.bf16.mxu0 0
    %2408 = vmatpush1.bf16.msra.mxu0 0
    %2409 = vmatprep.subr.bf16.mxu0 0
    %2410 = vmatpush1.bf16.msra.mxu0 0
    %2411 = vmatprep.subr.bf16.mxu0 0
    %2412 = vmatpush1.bf16.msra.mxu0 0
    %2413 = vmatprep.subr.bf16.mxu0 0
    %2414 = vmatpush1.bf16.msra.mxu0 0
    %2415 = vmatprep.subr.bf16.mxu0 0
    %2416 = vmatpush1.bf16.msra.mxu0 0
    %2417 = vmatprep.subr.bf16.mxu0 0
    %2418 = vmatpush1.bf16.msra.mxu0 0
    %2419 = vmatprep.subr.bf16.mxu0 0
    %2420 = vmatpush1.bf16.msra.mxu0 0
    %2421 = vmatprep.subr.bf16.mxu0 0
    %2422 = vmatpush1.bf16.msra.mxu0 0
    %2423 = vmatprep.mubr.bf16.mxu0 0
    %2424 = vmatmul.mubr.bf16.gmra.mrb[0].mxu0 %v987
    %v2425 = vpop.f32.mrb[0].mxu0
    %v2426 = vadd.f32 %v2341, %v2425
    %v2427 = vpop.f32.mrb[0].mxu0
    %v2428 = vpop.f32.mrb[0].mxu0
    %v2429 = vadd.f32 %v2341, %v2428
    %v2430 = vpop.f32.mrb[0].mxu0
    %2431 = vmatprep.mubr.bf16.mxu0 0
    %2432 = vmatmul.mubr.bf16.gmra.mrb[0].mxu0 %v991
    %v2433 = vpop.f32.mrb[0].mxu0
    %v2434 = vadd.f32 %v2341, %v2433
    %v2435 = vpop.f32.mrb[0].mxu0
    %v2436 = vpop.f32.mrb[0].mxu0
    %v2437 = vadd.f32 %v2341, %v2436
    %v2438 = vpop.f32.mrb[0].mxu0
    %2439 = vmatprep.mubr.bf16.mxu0 0
    %2440 = vmatmul.mubr.bf16.gmra.mrb[0].mxu0 %v995
    %v2441 = vpop.f32.mrb[0].mxu0
    %v2442 = vadd.f32 %v2341, %v2441
    %v2443 = vpop.f32.mrb[0].mxu0
    %v2444 = vpop.f32.mrb[0].mxu0
    %v2445 = vadd.f32 %v2341, %v2444
    %v2446 = vpop.f32.mrb[0].mxu0
    %2447 = vmatprep.mubr.bf16.mxu0 0
    %2448 = vmatmul.mubr.bf16.gmra.mrb[0].mxu0 %v999
    %v2449 = vpop.f32.mrb[0].mxu0
    %v2450 = vadd.f32 %v2341, %v2449
    %v2451 = vpop.f32.mrb[0].mxu0
    %v2452 = vpop.f32.mrb[0].mxu0
    %v2453 = vadd.f32 %v2341, %v2452
    %v2454 = vpop.f32.mrb[0].mxu0
    %2455 = vmatprep.mubr.bf16.mxu0 0
    %2456 = vmatmul.mubr.bf16.gmra.mrb[0].mxu0 %v1003
    %v2457 = vpop.f32.mrb[0].mxu0
    %v2458 = vadd.f32 %v2341, %v2457
    %v2459 = vpop.f32.mrb[0].mxu0
    %v2460 = vpop.f32.mrb[0].mxu0
    %v2461 = vadd.f32 %v2341, %v2460
    %v2462 = vpop.f32.mrb[0].mxu0
    %2463 = vmatprep.mubr.bf16.mxu0 0
    %2464 = vmatmul.mubr.bf16.gmra.mrb[0].mxu0 %v1007
    %v2465 = vpop.f32.mrb[0].mxu0
    %v2466 = vadd.f32 %v2341, %v2465
    %v2467 = vpop.f32.mrb[0].mxu0
    %v2468 = vpop.f32.mrb[0].mxu0
    %v2469 = vadd.f32 %v2341, %v2468
    %v2470 = vpop.f32.mrb[0].mxu0
    %2471 = vmatprep.mubr.bf16.mxu0 0
    %2472 = vmatmul.mubr.bf16.gmra.mrb[0].mxu0 %v1011
    %v2473 = vpop.f32.mrb[0].mxu0
    %v2474 = vadd.f32 %v2341, %v2473
    %v2475 = vpop.f32.mrb[0].mxu0
    %v2476 = vpop.f32.mrb[0].mxu0
    %v2477 = vadd.f32 %v2341, %v2476
    %v2478 = vpop.f32.mrb[0].mxu0
    %2479 = vmatprep.mubr.bf16.mxu0 0
    %2480 = vmatmul.mubr.bf16.gmra.mrb[0].mxu0 %v1015
    %v2481 = vpop.f32.mrb[0].mxu0
    %v2482 = vadd.f32 %v2341, %v2481
    %v2483 = vpop.f32.mrb[0].mxu0
    %v2484 = vpop.f32.mrb[0].mxu0
    %v2485 = vadd.f32 %v2341, %v2484
    %v2486 = vpop.f32.mrb[0].mxu0
    %2487 = vmatprep.mubr.bf16.mxu0 0
    %2488 = vmatmul.mubr.bf16.gmra.mrb[0].mxu0 %v1019
    %v2489 = vpop.f32.mrb[0].mxu0
    %v2490 = vadd.f32 %v2341, %v2489
    %v2491 = vpop.f32.mrb[0].mxu0
    %v2492 = vpop.f32.mrb[0].mxu0
    %v2493 = vadd.f32 %v2341, %v2492
    %v2494 = vpop.f32.mrb[0].mxu0
    %2495 = vmatprep.mubr.bf16.mxu0 0
    %2496 = vmatmul.mubr.bf16.gmra.mrb[0].mxu0 %v1023
    %v2497 = vpop.f32.mrb[0].mxu0
    %v2498 = vadd.f32 %v2341, %v2497
    %v2499 = vpop.f32.mrb[0].mxu0
    %v2500 = vpop.f32.mrb[0].mxu0
    %v2501 = vadd.f32 %v2341, %v2500
    %v2502 = vpop.f32.mrb[0].mxu0
    %2503 = vmatprep.mubr.bf16.mxu0 0
    %2504 = vmatmul.mubr.bf16.gmra.mrb[0].mxu0 %v1027
    %v2505 = vpop.f32.mrb[0].mxu0
    %v2506 = vadd.f32 %v2341, %v2505
    %v2507 = vpop.f32.mrb[0].mxu0
    %v2508 = vpop.f32.mrb[0].mxu0
    %v2509 = vadd.f32 %v2341, %v2508
    %v2510 = vpop.f32.mrb[0].mxu0
    %2511 = vmatprep.mubr.bf16.mxu0 0
    %2512 = vmatmul.mubr.bf16.gmra.mrb[0].mxu0 %v1031
    %v2513 = vpop.f32.mrb[0].mxu0
    %v2514 = vadd.f32 %v2341, %v2513
    %v2515 = vpop.f32.mrb[0].mxu0
    %v2516 = vpop.f32.mrb[0].mxu0
    %v2517 = vadd.f32 %v2341, %v2516
    %v2518 = vpop.f32.mrb[0].mxu0
    %2519 = vmatprep.mubr.bf16.mxu0 0
    %2520 = vmatmul.mubr.bf16.gmra.mrb[0].mxu0 %v1035
    %v2521 = vpop.f32.mrb[0].mxu0
    %v2522 = vadd.f32 %v2341, %v2521
    %v2523 = vpop.f32.mrb[0].mxu0
    %v2524 = vpop.f32.mrb[0].mxu0
    %v2525 = vadd.f32 %v2341, %v2524
    %v2526 = vpop.f32.mrb[0].mxu0
    %2527 = vmatprep.mubr.bf16.mxu0 0
    %2528 = vmatmul.mubr.bf16.gmra.mrb[0].mxu0 %v1039
    %v2529 = vpop.f32.mrb[0].mxu0
    %v2530 = vadd.f32 %v2341, %v2529
    %v2531 = vpop.f32.mrb[0].mxu0
    %v2532 = vpop.f32.mrb[0].mxu0
    %v2533 = vadd.f32 %v2341, %v2532
    %v2534 = vpop.f32.mrb[0].mxu0
    %2535 = vmatprep.mubr.bf16.mxu0 0
    %2536 = vmatmul.mubr.bf16.gmra.mrb[0].mxu0 %v1043
    %v2537 = vpop.f32.mrb[0].mxu0
    %v2538 = vadd.f32 %v2341, %v2537
    %v2539 = vpop.f32.mrb[0].mxu0
    %v2540 = vpop.f32.mrb[0].mxu0
    %v2541 = vadd.f32 %v2341, %v2540
    %v2542 = vpop.f32.mrb[0].mxu0
    %2543 = vmatprep.mubr.bf16.mxu0 0
    %2544 = vmatmul.mubr.bf16.gmra.mrb[0].mxu0 %v1047
    %v2545 = vpop.f32.mrb[0].mxu0
    %v2546 = vadd.f32 %v2341, %v2545
    %v2547 = vpop.f32.mrb[0].mxu0
    %v2548 = vpop.f32.mrb[0].mxu0
    %v2549 = vadd.f32 %v2341, %v2548
    %v2550 = vpop.f32.mrb[0].mxu0
    %2551 = vdwg.mxu0
    %v2552 = vmax.f32 %v2426, 0.0
    %v2553 = vmax.f32 %v2429, 0.0
    %v2554 = vmax.f32 %v2434, 0.0
    %v2555 = vmax.f32 %v2437, 0.0
    %v2556 = vmax.f32 %v2442, 0.0
    %v2557 = vmax.f32 %v2445, 0.0
    %v2558 = vmax.f32 %v2450, 0.0
    %v2559 = vmax.f32 %v2453, 0.0
    %v2560 = vmax.f32 %v2458, 0.0
    %v2561 = vmax.f32 %v2461, 0.0
    %v2562 = vmax.f32 %v2466, 0.0
    %v2563 = vmax.f32 %v2469, 0.0
    %v2564 = vmax.f32 %v2474, 0.0
    %v2565 = vmax.f32 %v2477, 0.0
    %v2566 = vmax.f32 %v2482, 0.0
    %v2567 = vmax.f32 %v2485, 0.0
    %v2568 = vmax.f32 %v2490, 0.0
    %v2569 = vmax.f32 %v2493, 0.0
    %v2570 = vmax.f32 %v2498, 0.0
    %v2571 = vmax.f32 %v2501, 0.0
    %v2572 = vmax.f32 %v2506, 0.0
    %v2573 = vmax.f32 %v2509, 0.0
    %v2574 = vmax.f32 %v2514, 0.0
    %v2575 = vmax.f32 %v2517, 0.0
    %v2576 = vmax.f32 %v2522, 0.0
    %v2577 = vmax.f32 %v2525, 0.0
    %v2578 = vmax.f32 %v2530, 0.0
    %v2579 = vmax.f32 %v2533, 0.0
    %v2580 = vmax.f32 %v2538, 0.0
    %v2581 = vmax.f32 %v2541, 0.0
    %v2582 = vmax.f32 %v2546, 0.0
    %v2583 = vmax.f32 %v2549, 0.0
    %v2584 = vpack.c.bf16 %v2553, %v2552
    %v2585 = vpack.c.bf16 %v2555, %v2554
    %v2586 = vpack.c.bf16 %v2557, %v2556
    %v2587 = vpack.c.bf16 %v2559, %v2558
    %v2588 = vpack.c.bf16 %v2561, %v2560
    %v2589 = vpack.c.bf16 %v2563, %v2562
    %v2590 = vpack.c.bf16 %v2565, %v2564
    %v2591 = vpack.c.bf16 %v2567, %v2566
    %v2592 = vpack.c.bf16 %v2569, %v2568
    %v2593 = vpack.c.bf16 %v2571, %v2570
    %v2594 = vpack.c.bf16 %v2573, %v2572
    %v2595 = vpack.c.bf16 %v2575, %v2574
    %v2596 = vpack.c.bf16 %v2577, %v2576
    %v2597 = vpack.c.bf16 %v2579, %v2578
    %v2598 = vpack.c.bf16 %v2581, %v2580
    %v2599 = vpack.c.bf16 %v2583, %v2582
    %v2616 = vunpack.c.l.b16 %v2584
    %v2617 = vunpack.c.h.b16 %v2584
    %v2618 = vunpack.c.l.b16 %v2585
    %v2619 = vunpack.c.h.b16 %v2585
    %v2620 = vunpack.c.l.b16 %v2586
    %v2621 = vunpack.c.h.b16 %v2586
    %v2622 = vunpack.c.l.b16 %v2587
    %v2623 = vunpack.c.h.b16 %v2587
    %v2624 = vunpack.c.l.b16 %v2588
    %v2625 = vunpack.c.h.b16 %v2588
    %v2626 = vunpack.c.l.b16 %v2589
    %v2627 = vunpack.c.h.b16 %v2589
    %v2628 = vunpack.c.l.b16 %v2590
    %v2629 = vunpack.c.h.b16 %v2590
    %v2630 = vunpack.c.l.b16 %v2591
    %v2631 = vunpack.c.h.b16 %v2591
    %v2632 = vunpack.c.l.b16 %v2592
    %v2633 = vunpack.c.h.b16 %v2592
    %v2634 = vunpack.c.l.b16 %v2593
    %v2635 = vunpack.c.h.b16 %v2593
    %v2636 = vunpack.c.l.b16 %v2594
    %v2637 = vunpack.c.h.b16 %v2594
    %v2638 = vunpack.c.l.b16 %v2595
    %v2639 = vunpack.c.h.b16 %v2595
    %v2640 = vunpack.c.l.b16 %v2596
    %v2641 = vunpack.c.h.b16 %v2596
    %v2642 = vunpack.c.l.b16 %v2597
    %v2643 = vunpack.c.h.b16 %v2597
    %v2644 = vunpack.c.l.b16 %v2598
    %v2645 = vunpack.c.h.b16 %v2598
    %v2646 = vunpack.c.l.b16 %v2599
    %v2647 = vunpack.c.h.b16 %v2599
    %v2648 = vpack.c.b16 %v2616, %v2616
    %v2649 = vpack.c.b16 %v2617, %v2617
    %v2650 = vpack.c.b16 %v2618, %v2618
    %v2651 = vpack.c.b16 %v2619, %v2619
    %v2652 = vpack.c.b16 %v2620, %v2620
    %v2653 = vpack.c.b16 %v2621, %v2621
    %v2654 = vpack.c.b16 %v2622, %v2622
    %v2655 = vpack.c.b16 %v2623, %v2623
    %v2656 = vpack.c.b16 %v2624, %v2624
    %v2657 = vpack.c.b16 %v2625, %v2625
    %v2658 = vpack.c.b16 %v2626, %v2626
    %v2659 = vpack.c.b16 %v2627, %v2627
    %v2660 = vpack.c.b16 %v2628, %v2628
    %v2661 = vpack.c.b16 %v2629, %v2629
    %v2662 = vpack.c.b16 %v2630, %v2630
    %v2663 = vpack.c.b16 %v2631, %v2631
    %v2664 = vpack.c.b16 %v2632, %v2632
    %v2665 = vpack.c.b16 %v2633, %v2633
    %v2666 = vpack.c.b16 %v2634, %v2634
    %v2667 = vpack.c.b16 %v2635, %v2635
    %v2668 = vpack.c.b16 %v2636, %v2636
    %v2669 = vpack.c.b16 %v2637, %v2637
    %v2670 = vpack.c.b16 %v2638, %v2638
    %v2671 = vpack.c.b16 %v2639, %v2639
    %v2672 = vpack.c.b16 %v2640, %v2640
    %v2673 = vpack.c.b16 %v2641, %v2641
    %v2674 = vpack.c.b16 %v2642, %v2642
    %v2675 = vpack.c.b16 %v2643, %v2643
    %v2676 = vpack.c.b16 %v2644, %v2644
    %v2677 = vpack.c.b16 %v2645, %v2645
    %v2678 = vpack.c.b16 %v2646, %v2646
    %v2679 = vpack.c.b16 %v2647, %v2647
    %2712 = vst [vmem:[#allocation17] sm:$0xf] %v2648
    %2713 = vst [vmem:[#allocation17 + $0x4] sm:$0xf] %v2649
    %2714 = vst [vmem:[#allocation17 + $0x8] sm:$0xf] %v2650
    %2715 = vst [vmem:[#allocation17 + $0xc] sm:$0xf] %v2651
    %2716 = vst [vmem:[#allocation17 + $0x10] sm:$0xf] %v2652
    %2717 = vst [vmem:[#allocation17 + $0x14] sm:$0xf] %v2653
    %2718 = vst [vmem:[#allocation17 + $0x18] sm:$0xf] %v2654
    %2719 = vst [vmem:[#allocation17 + $0x1c] sm:$0xf] %v2655
    %2720 = vst [vmem:[#allocation17 + $0x20] sm:$0xf] %v2656
    %2721 = vst [vmem:[#allocation17 + $0x24] sm:$0xf] %v2657
    %2722 = vst [vmem:[#allocation17 + $0x28] sm:$0xf] %v2658
    %2723 = vst [vmem:[#allocation17 + $0x2c] sm:$0xf] %v2659
    %2724 = vst [vmem:[#allocation17 + $0x30] sm:$0xf] %v2660
    %2725 = vst [vmem:[#allocation17 + $0x34] sm:$0xf] %v2661
    %2726 = vst [vmem:[#allocation17 + $0x38] sm:$0xf] %v2662
    %2727 = vst [vmem:[#allocation17 + $0x3c] sm:$0xf] %v2663
    %2728 = vst [vmem:[#allocation17 + $0x40] sm:$0xf] %v2664
    %2729 = vst [vmem:[#allocation17 + $0x44] sm:$0xf] %v2665
    %2730 = vst [vmem:[#allocation17 + $0x48] sm:$0xf] %v2666
    %2731 = vst [vmem:[#allocation17 + $0x4c] sm:$0xf] %v2667
    %2732 = vst [vmem:[#allocation17 + $0x50] sm:$0xf] %v2668
    %2733 = vst [vmem:[#allocation17 + $0x54] sm:$0xf] %v2669
    %2734 = vst [vmem:[#allocation17 + $0x58] sm:$0xf] %v2670
    %2735 = vst [vmem:[#allocation17 + $0x5c] sm:$0xf] %v2671
    %2736 = vst [vmem:[#allocation17 + $0x60] sm:$0xf] %v2672
    %2737 = vst [vmem:[#allocation17 + $0x64] sm:$0xf] %v2673
    %2738 = vst [vmem:[#allocation17 + $0x68] sm:$0xf] %v2674
    %2739 = vst [vmem:[#allocation17 + $0x6c] sm:$0xf] %v2675
    %2740 = vst [vmem:[#allocation17 + $0x70] sm:$0xf] %v2676
    %2741 = vst [vmem:[#allocation17 + $0x74] sm:$0xf] %v2677
    %2742 = vst [vmem:[#allocation17 + $0x78] sm:$0xf] %v2678
    %2743 = vst [vmem:[#allocation17 + $0x7c] sm:$0xf] %v2679
    // Predicated region
    $region70: #{tpu_custom_call.1} parent=1 // pred_check
      _
    $region71: #{tpu_custom_call.1} parent=1 // pred_check_branch
      %2745 = sbr.rel (0) target = $region73
    $region72: #{tpu_custom_call.1} parent=1 // pred_region
      %s2747 = ssub.s32 2048, 2048
      %2748 = vsyncadd [#allocation4], %s2747
      %s2749 = sshll.u32 [#allocation13], 4
      %s2750 = int_to_ptr.vmem [resolvable:$true] %s2749
      %2755 = dma.vmem_to_hbm [thread:$0]  %s2750, 2048, %s11, [#allocation4], 64, 64, 4
    $region73: #{tpu_custom_call.1} parent=1 // pred_fallthru
      _
    // Predicated region
    $region74: #{tpu_custom_call.1} parent=1 // pred_check
      _
    $region75: #{tpu_custom_call.1} parent=1 // pred_check_branch
      %2757 = sbr.rel (0) target = $region77
    $region76: #{tpu_custom_call.1} parent=1 // pred_region
      %s2759 = ssub.s32 2048, 2048
      %2760 = vsyncadd [#allocation15], %s2759
      %s2761 = sshll.u32 [#allocation14], 4
      %s2762 = int_to_ptr.vmem [resolvable:$true] %s2761
      %2767 = dma.vmem_to_hbm [thread:$0]  %s2762, 2048, %s12, [#allocation15], 64, 64, 4
    $region77: #{tpu_custom_call.1} parent=1 // pred_fallthru
      _
    // Predicated region
    $region78: #{tpu_custom_call.1} parent=1 // pred_check
      _
    $region79: #{tpu_custom_call.1} parent=1 // pred_check_branch
      %2769 = sbr.rel (0) target = $region81
    $region80: #{tpu_custom_call.1} parent=1 // pred_region
      %s2771 = ssub.s32 2048, 2048
      %2772 = vsyncadd [#allocation15], %s2771
      %s2773 = sshll.u32 [#allocation16], 4
      %s2774 = int_to_ptr.vmem [resolvable:$true] %s2773
      %2779 = dma.vmem_to_hbm [thread:$0]  %s2774, 2048, %s13, [#allocation15], 64, 64, 4
    $region81: #{tpu_custom_call.1} parent=1 // pred_fallthru
      _
    // Predicated region
    $region82: #{tpu_custom_call.1} parent=1 // pred_check
      _
    $region83: #{tpu_custom_call.1} parent=1 // pred_check_branch
      %2781 = sbr.rel (0) target = $region85
    $region84: #{tpu_custom_call.1} parent=1 // pred_region
      %s2783 = ssub.s32 2048, 2048
      %2784 = vsyncadd [#allocation18], %s2783
      %s2785 = sshll.u32 [#allocation17], 4
      %s2786 = int_to_ptr.vmem [resolvable:$true] %s2785
      %2791 = dma.vmem_to_hbm [thread:$0]  %s2786, 2048, %s14, [#allocation18], 64, 64, 4
    $region85: #{tpu_custom_call.1} parent=1 // pred_fallthru
      _
    // Predicated region
    $region86: #{tpu_custom_call.1} parent=1 // pred_check
      _
    $region87: #{tpu_custom_call.1} parent=1 // pred_check_branch
      %2793 = sbr.rel (0) target = $region89
    $region88: #{tpu_custom_call.1} parent=1 // pred_region
      %2794 = dma.done [#allocation4], 2048
    $region89: #{tpu_custom_call.1} parent=1 // pred_fallthru
      _
    // Predicated region
    $region90: #{tpu_custom_call.1} parent=1 // pred_check
      _
    $region91: #{tpu_custom_call.1} parent=1 // pred_check_branch
      %2796 = sbr.rel (0) target = $region93
    $region92: #{tpu_custom_call.1} parent=1 // pred_region
      %2797 = dma.done [#allocation15], 2048
    $region93: #{tpu_custom_call.1} parent=1 // pred_fallthru
      _
    // Predicated region
    $region94: #{tpu_custom_call.1} parent=1 // pred_check
      _
    $region95: #{tpu_custom_call.1} parent=1 // pred_check_branch
      %2799 = sbr.rel (0) target = $region97
    $region96: #{tpu_custom_call.1} parent=1 // pred_region
      %2800 = dma.done [#allocation15], 2048
    $region97: #{tpu_custom_call.1} parent=1 // pred_fallthru
      _
    // Predicated region
    $region98: #{tpu_custom_call.1} parent=1 // pred_check
      _
    $region99: #{tpu_custom_call.1} parent=1 // pred_check_branch
      %2802 = sbr.rel (0) target = $region101
    $region100: #{tpu_custom_call.1} parent=1 // pred_region
      %2803 = dma.done [#allocation18], 2048
    $region101: #{tpu_custom_call.1} parent=1 // pred_fallthru
      _
    %2804 = vsyncpa [#allocation3], 1
    %2805 = vsyncpa [#allocation6], 1
    %2806 = vsyncpa [#allocation9], 1
    %2807 = vsyncpa [#allocation12], 1
    %2808 = vsyncpa [#allocation4], 1
    %2809 = vsyncpa [#allocation15], 1
    %2810 = vsyncpa [#allocation18], 1

</llo_original>
